<compile_context>
chip_gen: v7x
topology: tpu7x:2x2x1
jax: 0.10.0
libtpu: 0.0.40
codegen_flags: <defaults>
</compile_context>

<pallas_src>
import numpy as np
import jax
import jax.numpy as jnp
from jax import lax
from jax.experimental import pallas as pl
from jax.experimental.pallas import tpu as pltpu

LARGE_NEGATIVE_NUMBER = -1000000000.0   # same constant the module uses
NEG_PAD = -1e9                          # padding value for padded tag slots


def _round_up(x, m):
    return ((x + m - 1) // m) * m


def _make_crf_kernel(TS, TP, TB, unroll):
    """Kernel over one (batch_tile, seq_chunk) grid cell.  State carried in VMEM scratch."""
    f32 = jnp.float32

    def kernel(start_ref, end_ref, trans_t_ref, exp_trans_t_ref,
               em_ref, tags_ref, mask_ref,
               nll_ref,
               u_ref, c_ref, num_ref, prev_oh_ref, last_oh_ref, exp_em_ref):
        s = pl.program_id(1)
        ns = pl.num_programs(1)

        start = start_ref[...]               # (TP, 1)   start_transitions (padded rows: -1e9)
        end = end_ref[...]                   # (TP, 1)   end_transitions   (padded rows: -1e9)
        trans_t = trans_t_ref[...]           # (TP, TP)  transitions.T  (log domain)
        exp_trans_t = exp_trans_t_ref[...]   # (TP, TP)  exp(transitions).T (padded rows/cols -> 0)

        tag_iota = lax.broadcasted_iota(jnp.int32, (TP, TB), 0)

        # ---------------- chunk prologue ----------------
        @pl.when(s == 0)
        def _init():
            # global t = 0: initialise recursion + gold-path state from the first timestep.
            em0 = em_ref[0].astype(f32)                               # (TP, TB)
            s0 = start + em0                                          # (TP, TB)
            tag0 = tags_ref[pl.ds(0, 1), :]                           # (1, TB)
            oh0 = (tag_iota == tag0).astype(f32)                      # (TP, TB)
            c0 = jnp.max(s0, axis=0, keepdims=True)                   # (1, TB)
            u_ref[...] = jnp.exp(s0 - c0)                             # padded tag rows -> exactly 0
            c_ref[...] = c0
            num_ref[...] = jnp.sum(s0 * oh0, axis=0, keepdims=True)   # start[tags0] + em[0, tags0]
            prev_oh_ref[...] = oh0
            last_oh_ref[...] = oh0

        # Bulk (off the serial chain): exp(em - max_tag(em)) for the whole chunk, and fold the
        # masked sum of the max_tag(em) shifts into the log-scale accumulator c once per chunk.
        em_all = em_ref[...].astype(f32)                              # (TS, TP, TB)
        em_max = jnp.max(em_all, axis=1, keepdims=True)               # (TS, 1, TB)
        exp_em_ref[...] = jnp.exp(em_all - em_max)

        mask_all = mask_ref[...]                                      # (TS, TB)
        row_iota = lax.broadcasted_iota(jnp.int32, (TS, TB), 0)
        # the very first global timestep is consumed by _init -> exclude it from the recursion
        m_rec = jnp.where(jnp.logical_and(row_iota == 0, s == 0), 0.0, mask_all)
        c_ref[...] = c_ref[...] + jnp.sum(em_max[:, 0, :] * m_rec, axis=0, keepdims=True)

        # ---------------- time recursion over the chunk ----------------
        def body(t, carry):
            u, c, num, prev_oh, last_oh = carry

            m_t = mask_ref[pl.ds(t, 1), :]                            # (1, TB)
            m_eff = jnp.where(jnp.logical_and(t == 0, s == 0), 0.0, m_t)

            # denominator: scaled (probability-domain) forward step -- serial chain
            v = jnp.dot(exp_trans_t, u, preferred_element_type=f32)   # (TP, TB)  MXU
            u_raw = v * exp_em_ref[t]                                 # (TP, TB)
            mmax = jnp.max(u_raw, axis=0, keepdims=True)              # (1, TB)
            r = pl.reciprocal(mmax, approx=True)                      # (1, TB)
            c = c - jnp.log(r) * m_eff                                # exact w.r.t. applied scale
            u = jnp.where(m_eff > 0.0, u_raw * r, u)

            # numerator: gold-path terms (independent of u / c -> overlaps with the chain)
            tag_t = tags_ref[pl.ds(t, 1), :]                          # (1, TB) int32
            oh_t = (tag_iota == tag_t).astype(f32)                    # (TP, TB)
            em_t = em_ref[t].astype(f32)                              # (TP, TB)
            rows = jnp.dot(trans_t, prev_oh, preferred_element_type=f32)   # trans[tags[t-1], :]
            g = jnp.sum((rows + em_t) * oh_t, axis=0, keepdims=True)  # trans[..]+em gathered at tags[t]
            num = num + g * m_eff
            last_oh = jnp.where(m_eff > 0.0, oh_t, last_oh)

            return (u, c, num, oh_t, last_oh)

        carry0 = (u_ref[...], c_ref[...], num_ref[...], prev_oh_ref[...], last_oh_ref[...])
        u, c, num, prev_oh, last_oh = lax.fori_loop(0, TS, body, carry0, unroll=unroll)

        u_ref[...] = u
        c_ref[...] = c
        num_ref[...] = num
        prev_oh_ref[...] = prev_oh
        last_oh_ref[...] = last_oh

        # ---------------- finalize at the last seq chunk ----------------
        @pl.when(s == ns - 1)
        def _finalize():
            exp_end = jnp.exp(end)                                    # (TP, 1); padded rows -> 0
            denom = jnp.log(jnp.sum(u * exp_end, axis=0, keepdims=True)) + c   # (1, TB)
            end_g = jnp.sum(end * last_oh, axis=0, keepdims=True)     # end_transitions[last tag]
            nll_ref[...] = denom - (num + end_g)

    return kernel


def crf_forward(emissions, tags, mask, start, end, trans,
                reduction="sum", ts=64, tb=128, unroll=8, em_dtype=jnp.bfloat16):
    """Pallas CRF forward (negative log-likelihood), matching CRF.forward (batch_first=False).

    emissions: (S, B, num_tags), tags: (S, B) int, mask: (S, B) {0,1}.
    NOTE (like torchcrf): mask[0] must be all ones for real batch entries.
    ts: max timesteps per seq chunk (sweep 32-128 for long sequences).
    tb: batch lanes per tile (multiple of 128; widen for very large B, keep B_pad/tb >= 2 on v7x).
    em_dtype: dtype of the streamed emissions (bf16 halves the only large HBM stream).
    """
    S, B, NT = emissions.shape
    f32 = jnp.float32
    if mask is None:
        mask = jnp.ones((S, B), dtype=jnp.uint8)

    TP = _round_up(NT, 8)                 # tags -> sublanes
    assert tb % 128 == 0
    TB = tb                               # batch -> lanes
    B_pad = _round_up(B, TB)
    TS = min(_round_up(ts, 8), _round_up(S, 8))   # timesteps per chunk (multiple of 8)
    S_pad = _round_up(S, TS)
    NB, NS = B_pad // TB, S_pad // TS
    unroll = max(1, min(unroll, TS))

    # parameters (padded tag slots are impossible: -1e9; exp(-1e9) == 0 keeps them dead)
    start_col = jnp.full((TP, 1), NEG_PAD, f32).at[:NT, 0].set(start.astype(f32))
    end_col = jnp.full((TP, 1), NEG_PAD, f32).at[:NT, 0].set(end.astype(f32))
    trans_p = jnp.full((TP, TP), NEG_PAD, f32).at[:NT, :NT].set(trans.astype(f32))
    trans_t = trans_p.T                    # (to, from)
    exp_trans_t = jnp.exp(trans_t)         # padded rows/cols -> exactly 0

    # inputs laid out (S, TP, B_pad): tags on sublanes, batch on lanes.
    # Cast to the streaming dtype *before* the transpose/pad so the relayout is done in bf16.
    em_c = emissions.astype(em_dtype)
    em_tr = jnp.transpose(em_c, (0, 2, 1))                                        # (S, NT, B)
    em_p = jnp.zeros((S_pad, TP, B_pad), em_dtype).at[:S, :NT, :B].set(em_tr)
    tags_p = jnp.zeros((S_pad, B_pad), jnp.int32).at[:S, :B].set(tags.astype(jnp.int32))
    mask_p = jnp.zeros((S_pad, B_pad), f32).at[:S, :B].set(mask.astype(f32))

    kernel = _make_crf_kernel(TS, TP, TB, unroll)
    nll = pl.pallas_call(
        kernel,
        out_shape=jax.ShapeDtypeStruct((1, B_pad), f32),
        grid=(NB, NS),
        in_specs=[
            pl.BlockSpec((TP, 1), lambda b, s: (0, 0)),          # start_transitions
            pl.BlockSpec((TP, 1), lambda b, s: (0, 0)),          # end_transitions
            pl.BlockSpec((TP, TP), lambda b, s: (0, 0)),         # transitions.T (log domain)
            pl.BlockSpec((TP, TP), lambda b, s: (0, 0)),         # exp(transitions).T
            pl.BlockSpec((TS, TP, TB), lambda b, s: (s, 0, b)),  # emissions chunk (bf16)
            pl.BlockSpec((TS, TB), lambda b, s: (s, b)),         # tags chunk
            pl.BlockSpec((TS, TB), lambda b, s: (s, b)),         # mask chunk
        ],
        out_specs=pl.BlockSpec((1, TB), lambda b, s: (0, b)),
        scratch_shapes=[
            pltpu.VMEM((TP, TB), f32),        # u      : scaled forward vector exp(score - c)
            pltpu.VMEM((1, TB), f32),         # c      : log-scale accumulator
            pltpu.VMEM((1, TB), f32),         # num    : gold-path score accumulator
            pltpu.VMEM((TP, TB), f32),        # prev-tag one-hot
            pltpu.VMEM((TP, TB), f32),        # last-masked-tag one-hot
            pltpu.VMEM((TS, TP, TB), f32),    # exp(em - max_tag(em)) for the chunk
        ],
        compiler_params=pltpu.CompilerParams(
            dimension_semantics=("parallel", "arbitrary")),
    )(start_col, end_col, trans_t, exp_trans_t, em_p, tags_p, mask_p)

    nll = nll[0, :B]                                              # drop batch padding

    if reduction == "none":
        return nll
    if reduction == "sum":
        return jnp.sum(nll)
    if reduction == "mean":
        return jnp.mean(nll)
    assert reduction == "token_mean"
    return jnp.sum(nll) / jnp.sum(mask.astype(f32))


def crf_nll_ref(em, tags, mask, start, end, trans):
    """Pure-JAX reference translated line-by-line from the PyTorch module (reduction='none')."""
    S, B, NT = em.shape
    maskf = mask.astype(em.dtype)
    # gold score
    score = start[tags[0]] + em[0, jnp.arange(B), tags[0]]
    for i in range(1, S):
        score = score + trans[tags[i - 1], tags[i]] * maskf[i]
        score = score + em[i, jnp.arange(B), tags[i]] * maskf[i]
    seq_ends = mask.astype(jnp.int32).sum(0) - 1
    last_tags = tags[seq_ends, jnp.arange(B)]
    score = score + end[last_tags]
    # normalizer
    z = start + em[0]
    for i in range(1, S):
        nxt = z[:, :, None] + trans[None, :, :] + em[i][:, None, :]
        nxt = jax.nn.logsumexp(nxt, axis=1)
        z = jnp.where(maskf[i][:, None] > 0, nxt, z)
    z = z + end
    denom = jax.nn.logsumexp(z, axis=1)
    return -(score - denom)


if __name__ == "__main__":
    NT = 5
    key = jax.random.PRNGKey(0)
    k0, k1, k2, k3, k4, k5, k6 = jax.random.split(key, 7)

    # deterministic parameter init: uniform(-0.1, 0.1), then mask impossible transitions
    start = jax.random.uniform(k0, (NT,), minval=-0.1, maxval=0.1, dtype=jnp.float32)
    end = jax.random.uniform(k1, (NT,), minval=-0.1, maxval=0.1, dtype=jnp.float32)
    trans = jax.random.uniform(k2, (NT, NT), minval=-0.1, maxval=0.1, dtype=jnp.float32)
    start = start.at[2].set(LARGE_NEGATIVE_NUMBER)      # start of I-X impossible
    trans = trans.at[0, 2].set(LARGE_NEGATIVE_NUMBER)   # O -> I impossible

    # case 1: single sequence chunk (S=8, B=2), f32 emissions stream, reduction='sum'
    S, B = 8, 2
    emissions = jax.random.normal(k3, (S, B, NT), dtype=jnp.float32)
    tags = jax.random.randint(k4, (S, B), 0, NT)
    lengths = jnp.array([S, S - 3], dtype=jnp.int32)
    mask = (jnp.arange(S)[:, None] < lengths[None, :]).astype(jnp.uint8)

    out = jax.block_until_ready(
        crf_forward(emissions, tags, mask, start, end, trans,
                    reduction="sum", em_dtype=jnp.float32))
    ref = jnp.sum(crf_nll_ref(emissions, tags, mask, start, end, trans))
    np.testing.assert_allclose(np.asarray(out), np.asarray(ref), rtol=1e-4, atol=1e-2)

    # case 2: multiple seq chunks carried through VMEM scratch (ts=8 -> 3 chunks, S=20, B=3)
    S2, B2 = 20, 3
    emissions2 = jax.random.normal(k5, (S2, B2, NT), dtype=jnp.float32)
    tags2 = jax.random.randint(k6, (S2, B2), 0, NT)
    lengths2 = jnp.array([S2, 13, 7], dtype=jnp.int32)
    mask2 = (jnp.arange(S2)[:, None] < lengths2[None, :]).astype(jnp.uint8)

    out2 = jax.block_until_ready(
        crf_forward(emissions2, tags2, mask2, start, end, trans,
                    reduction="none", ts=8, em_dtype=jnp.float32))
    ref2 = crf_nll_ref(emissions2, tags2, mask2, start, end, trans)
    np.testing.assert_allclose(np.asarray(out2), np.asarray(ref2), rtol=1e-4, atol=1e-2)

    # case 3: default fast path (bf16 emissions stream, ts=64 -> single chunk here);
    # reference uses the same bf16-rounded emissions so the check isolates kernel numerics.
    out3 = jax.block_until_ready(
        crf_forward(emissions2, tags2, mask2, start, end, trans, reduction="none"))
    em_q = emissions2.astype(jnp.bfloat16).astype(jnp.float32)
    ref3 = crf_nll_ref(em_q, tags2, mask2, start, end, trans)
    np.testing.assert_allclose(np.asarray(out3), np.asarray(ref3), rtol=1e-4, atol=2e-2)

    # TODO(synk): CRF.decode / _viterbi_decode (host-side backtracking into Python lists) not ported.
    print("KERNEL_OK")
</pallas_src>

<mosaic_0001>
module attributes {stable_mosaic.version = 11 : i64} {
  func.func @kernel(%arg0: i32, %arg1: i32, %arg2: memref<8x1xf32, #tpu.memory_space<vmem>>, %arg3: memref<8x1xf32, #tpu.memory_space<vmem>>, %arg4: memref<8x8xf32, #tpu.memory_space<vmem>>, %arg5: memref<8x8xf32, #tpu.memory_space<vmem>>, %arg6: memref<8x8x128xf32, #tpu.memory_space<vmem>>, %arg7: memref<8x128xi32, #tpu.memory_space<vmem>>, %arg8: memref<8x128xf32, #tpu.memory_space<vmem>>, %arg9: memref<1x128xf32, #tpu.memory_space<vmem>>, %arg10: memref<8x128xf32, #tpu.memory_space<vmem>>, %arg11: memref<1x128xf32, #tpu.memory_space<vmem>>, %arg12: memref<1x128xf32, #tpu.memory_space<vmem>>, %arg13: memref<8x128xf32, #tpu.memory_space<vmem>>, %arg14: memref<8x128xf32, #tpu.memory_space<vmem>>, %arg15: memref<8x8x128xf32, #tpu.memory_space<vmem>>) attributes {dimension_semantics = [#tpu.dimension_semantics<parallel>, #tpu.dimension_semantics<arbitrary>], iteration_bounds = array<i64: 1, 1>, scalar_prefetch = 0 : i64, scratch_operands = 6 : i64, tpu.core_type = #tpu.core_type<tc>, window_params = [{pipeline_mode = #tpu.pipeline_mode<synchronous>, transform_indices = @transform_0, window_bounds = array<i64: 8, 1>}, {pipeline_mode = #tpu.pipeline_mode<synchronous>, transform_indices = @transform_1, window_bounds = array<i64: 8, 1>}, {pipeline_mode = #tpu.pipeline_mode<synchronous>, transform_indices = @transform_2, window_bounds = array<i64: 8, 8>}, {pipeline_mode = #tpu.pipeline_mode<synchronous>, transform_indices = @transform_3, window_bounds = array<i64: 8, 8>}, {transform_indices = @transform_4, window_bounds = array<i64: 8, 8, 128>}, {transform_indices = @transform_5, window_bounds = array<i64: 8, 128>}, {transform_indices = @transform_6, window_bounds = array<i64: 8, 128>}, {transform_indices = @transform_7, window_bounds = array<i64: 1, 128>}]} {
    %c0 = arith.constant 0 : index
    %c0_0 = arith.constant 0 : index
    %0 = vector.load %arg2[%c0, %c0_0] : memref<8x1xf32, #tpu.memory_space<vmem>>, vector<8x1xf32>
    %c0_1 = arith.constant 0 : index
    %c0_2 = arith.constant 0 : index
    %1 = vector.load %arg3[%c0_1, %c0_2] : memref<8x1xf32, #tpu.memory_space<vmem>>, vector<8x1xf32>
    %c0_3 = arith.constant 0 : index
    %c0_4 = arith.constant 0 : index
    %2 = vector.load %arg4[%c0_3, %c0_4] : memref<8x8xf32, #tpu.memory_space<vmem>>, vector<8x8xf32>
    %c0_5 = arith.constant 0 : index
    %c0_6 = arith.constant 0 : index
    %3 = vector.load %arg5[%c0_5, %c0_6] : memref<8x8xf32, #tpu.memory_space<vmem>>, vector<8x8xf32>
    %4 = tpu.iota {dimensions = array<i32: 0>} : vector<8x128xi32>
    %c0_i32 = arith.constant 0 : i32
    %5 = arith.cmpi eq, %arg1, %c0_i32 : i32
    %6 = arith.extui %5 : i1 to i32
    %c0_i32_7 = arith.constant 0 : i32
    %7 = arith.cmpi ne, %6, %c0_i32_7 : i32
    scf.if %7 {
      %c0_167 = arith.constant 0 : index
      %c0_168 = arith.constant 0 : index
      %c0_169 = arith.constant 0 : index
      %412 = vector.load %arg6[%c0_167, %c0_168, %c0_169] : memref<8x8x128xf32, #tpu.memory_space<vmem>>, vector<1x8x128xf32>
      %413 = vector.shape_cast %412 : vector<1x8x128xf32> to vector<8x128xf32>
      %414 = vector.broadcast %0 : vector<8x1xf32> to vector<8x128xf32>
      %415 = arith.addf %414, %413 : vector<8x128xf32>
      %c0_170 = arith.constant 0 : index
      %c0_171 = arith.constant 0 : index
      %416 = vector.load %arg7[%c0_170, %c0_171] : memref<8x128xi32, #tpu.memory_space<vmem>>, vector<1x128xi32>
      %417 = vector.broadcast %416 : vector<1x128xi32> to vector<8x128xi32>
      %418 = arith.cmpi eq, %4, %417 : vector<8x128xi32>
      %419 = arith.extui %418 : vector<8x128xi1> to vector<8x128xi32>
      %420 = arith.sitofp %419 : vector<8x128xi32> to vector<8x128xf32>
      %cst_172 = arith.constant dense<0xFF800000> : vector<128xf32>
      %421 = vector.multi_reduction <maximumf>, %415, %cst_172 [0] : vector<8x128xf32> to vector<128xf32>
      %422 = vector.shape_cast %421 : vector<128xf32> to vector<1x128xf32>
      %423 = vector.broadcast %422 : vector<1x128xf32> to vector<8x128xf32>
      %424 = arith.subf %415, %423 : vector<8x128xf32>
      %425 = math.exp %424 : vector<8x128xf32>
      %c0_173 = arith.constant 0 : index
      %c0_174 = arith.constant 0 : index
      %426 = vector.load %arg10[%c0_173, %c0_174] : memref<8x128xf32, #tpu.memory_space<vmem>>, vector<8x128xf32>
      tpu.vector_store %arg10[%c0_173, %c0_174], %425 {strides = array<i32>} : memref<8x128xf32, #tpu.memory_space<vmem>>, vector<8x128xf32>,
      %c0_175 = arith.constant 0 : index
      %c0_176 = arith.constant 0 : index
      %427 = vector.load %arg11[%c0_175, %c0_176] : memref<1x128xf32, #tpu.memory_space<vmem>>, vector<1x128xf32>
      tpu.vector_store %arg11[%c0_175, %c0_176], %422 {strides = array<i32>} : memref<1x128xf32, #tpu.memory_space<vmem>>, vector<1x128xf32>,
      %428 = arith.mulf %415, %420 : vector<8x128xf32>
      %cst_177 = arith.constant dense<0.000000e+00> : vector<128xf32>
      %429 = vector.multi_reduction <add>, %428, %cst_177 [0] : vector<8x128xf32> to vector<128xf32>
      %430 = vector.shape_cast %429 : vector<128xf32> to vector<1x128xf32>
      %c0_178 = arith.constant 0 : index
      %c0_179 = arith.constant 0 : index
      %431 = vector.load %arg12[%c0_178, %c0_179] : memref<1x128xf32, #tpu.memory_space<vmem>>, vector<1x128xf32>
      tpu.vector_store %arg12[%c0_178, %c0_179], %430 {strides = array<i32>} : memref<1x128xf32, #tpu.memory_space<vmem>>, vector<1x128xf32>,
      %c0_180 = arith.constant 0 : index
      %c0_181 = arith.constant 0 : index
      %432 = vector.load %arg13[%c0_180, %c0_181] : memref<8x128xf32, #tpu.memory_space<vmem>>, vector<8x128xf32>
      tpu.vector_store %arg13[%c0_180, %c0_181], %420 {strides = array<i32>} : memref<8x128xf32, #tpu.memory_space<vmem>>, vector<8x128xf32>,
      %c0_182 = arith.constant 0 : index
      %c0_183 = arith.constant 0 : index
      %433 = vector.load %arg14[%c0_182, %c0_183] : memref<8x128xf32, #tpu.memory_space<vmem>>, vector<8x128xf32>
      tpu.vector_store %arg14[%c0_182, %c0_183], %420 {strides = array<i32>} : memref<8x128xf32, #tpu.memory_space<vmem>>, vector<8x128xf32>,
    } else {
    }
    %c0_8 = arith.constant 0 : index
    %c0_9 = arith.constant 0 : index
    %c0_10 = arith.constant 0 : index
    %8 = vector.load %arg6[%c0_8, %c0_9, %c0_10] : memref<8x8x128xf32, #tpu.memory_space<vmem>>, vector<8x8x128xf32>
    %cst = arith.constant dense<0xFF800000> : vector<8x128xf32>
    %9 = vector.multi_reduction <maximumf>, %8, %cst [1] : vector<8x8x128xf32> to vector<8x128xf32>
    %10 = vector.shape_cast %9 : vector<8x128xf32> to vector<8x1x128xf32>
    %11 = vector.broadcast %10 : vector<8x1x128xf32> to vector<8x8x128xf32>
    %12 = arith.subf %8, %11 : vector<8x8x128xf32>
    %13 = math.exp %12 : vector<8x8x128xf32>
    %c0_11 = arith.constant 0 : index
    %c0_12 = arith.constant 0 : index
    %c0_13 = arith.constant 0 : index
    %14 = vector.load %arg15[%c0_11, %c0_12, %c0_13] : memref<8x8x128xf32, #tpu.memory_space<vmem>>, vector<8x8x128xf32>
    tpu.vector_store %arg15[%c0_11, %c0_12, %c0_13], %13 {strides = array<i32>} : memref<8x8x128xf32, #tpu.memory_space<vmem>>, vector<8x8x128xf32>,
    %c0_14 = arith.constant 0 : index
    %c0_15 = arith.constant 0 : index
    %15 = vector.load %arg8[%c0_14, %c0_15] : memref<8x128xf32, #tpu.memory_space<vmem>>, vector<8x128xf32>
    %16 = tpu.iota {dimensions = array<i32: 0>} : vector<8x128xi32>
    %c0_i32_16 = arith.constant 0 : i32
    %17 = vector.broadcast %c0_i32_16 : i32 to vector<8x128xi32>
    %18 = arith.cmpi eq, %16, %17 : vector<8x128xi32>
    %c0_i32_17 = arith.constant 0 : i32
    %19 = arith.cmpi eq, %arg1, %c0_i32_17 : i32
    %20 = vector.broadcast %19 : i1 to vector<8x128xi1>
    %21 = arith.andi %18, %20 : vector<8x128xi1>
    %cst_18 = arith.constant 0.000000e+00 : f32
    %22 = vector.broadcast %cst_18 : f32 to vector<8x128xf32>
    %23 = arith.select %21, %22, %15 : vector<8x128xi1>, vector<8x128xf32>
    %c0_19 = arith.constant 0 : index
    %c0_20 = arith.constant 0 : index
    %24 = vector.load %arg11[%c0_19, %c0_20] : memref<1x128xf32, #tpu.memory_space<vmem>>, vector<1x128xf32>
    %25 = vector.shape_cast %10 : vector<8x1x128xf32> to vector<8x128xf32>
    %26 = arith.mulf %25, %23 : vector<8x128xf32>
    %cst_21 = arith.constant dense<0.000000e+00> : vector<128xf32>
    %27 = vector.multi_reduction <add>, %26, %cst_21 [0] : vector<8x128xf32> to vector<128xf32>
    %28 = vector.shape_cast %27 : vector<128xf32> to vector<1x128xf32>
    %29 = arith.addf %24, %28 : vector<1x128xf32>
    %c0_22 = arith.constant 0 : index
    %c0_23 = arith.constant 0 : index
    %30 = vector.load %arg11[%c0_22, %c0_23] : memref<1x128xf32, #tpu.memory_space<vmem>>, vector<1x128xf32>
    tpu.vector_store %arg11[%c0_22, %c0_23], %29 {strides = array<i32>} : memref<1x128xf32, #tpu.memory_space<vmem>>, vector<1x128xf32>,
    %c0_24 = arith.constant 0 : index
    %c0_25 = arith.constant 0 : index
    %31 = vector.load %arg10[%c0_24, %c0_25] : memref<8x128xf32, #tpu.memory_space<vmem>>, vector<8x128xf32>
    %c0_26 = arith.constant 0 : index
    %c0_27 = arith.constant 0 : index
    %32 = vector.load %arg11[%c0_26, %c0_27] : memref<1x128xf32, #tpu.memory_space<vmem>>, vector<1x128xf32>
    %c0_28 = arith.constant 0 : index
    %c0_29 = arith.constant 0 : index
    %33 = vector.load %arg12[%c0_28, %c0_29] : memref<1x128xf32, #tpu.memory_space<vmem>>, vector<1x128xf32>
    %c0_30 = arith.constant 0 : index
    %c0_31 = arith.constant 0 : index
    %34 = vector.load %arg13[%c0_30, %c0_31] : memref<8x128xf32, #tpu.memory_space<vmem>>, vector<8x128xf32>
    %c0_32 = arith.constant 0 : index
    %c0_33 = arith.constant 0 : index
    %35 = vector.load %arg14[%c0_32, %c0_33] : memref<8x128xf32, #tpu.memory_space<vmem>>, vector<8x128xf32>
    %c0_i32_34 = arith.constant 0 : i32
    %36 = arith.index_cast %c0_i32_34 : i32 to index
    %c0_35 = arith.constant 0 : index
    %37 = vector.load %arg8[%36, %c0_35] : memref<8x128xf32, #tpu.memory_space<vmem>>, vector<1x128xf32>
    %c0_i32_36 = arith.constant 0 : i32
    %38 = arith.cmpi eq, %c0_i32_34, %c0_i32_36 : i32
    %c0_i32_37 = arith.constant 0 : i32
    %39 = arith.cmpi eq, %arg1, %c0_i32_37 : i32
    %40 = arith.andi %38, %39 : i1
    %cst_38 = arith.constant 0.000000e+00 : f32
    %41 = vector.broadcast %cst_38 : f32 to vector<1x128xf32>
    %42 = arith.select %40, %41, %37 : vector<1x128xf32>
    %cst_39 = arith.constant dense<0.000000e+00> : vector<8x128xf32>
    %43 = tpu.matmul %3, %31, %cst_39 {dimension_numbers = #tpu.dot_dimension_numbers<[1], [0], [0], [1], [0, 0, 1, 1], [], []>} : vector<8x8xf32>, vector<8x128xf32>, vector<8x128xf32> -> vector<8x128xf32>
    %44 = arith.index_cast %c0_i32_34 : i32 to index
    %c0_40 = arith.constant 0 : index
    %c0_41 = arith.constant 0 : index
    %45 = vector.load %arg15[%44, %c0_40, %c0_41] : memref<8x8x128xf32, #tpu.memory_space<vmem>>, vector<1x8x128xf32>
    %46 = vector.shape_cast %45 : vector<1x8x128xf32> to vector<8x128xf32>
    %47 = arith.mulf %43, %46 : vector<8x128xf32>
    %cst_42 = arith.constant dense<0xFF800000> : vector<128xf32>
    %48 = vector.multi_reduction <maximumf>, %47, %cst_42 [0] : vector<8x128xf32> to vector<128xf32>
    %49 = vector.shape_cast %48 : vector<128xf32> to vector<1x128xf32>
    %50 = tpu.reciprocal %49 {approx = true} : vector<1x128xf32> -> vector<1x128xf32>
    %51 = math.log %50 : vector<1x128xf32>
    %52 = arith.mulf %51, %42 : vector<1x128xf32>
    %53 = arith.subf %32, %52 : vector<1x128xf32>
    %cst_43 = arith.constant 0.000000e+00 : f32
    %54 = vector.broadcast %cst_43 : f32 to vector<1x128xf32>
    %55 = arith.cmpf ogt, %42, %54 : vector<1x128xf32>
    %56 = vector.broadcast %50 : vector<1x128xf32> to vector<8x128xf32>
    %57 = arith.mulf %47, %56 : vector<8x128xf32>
    %58 = vector.shape_cast %55 : vector<1x128xi1> to vector<1x128xi1>
    %59 = vector.broadcast %58 : vector<1x128xi1> to vector<8x128xi1>
    %60 = arith.select %59, %57, %31 : vector<8x128xi1>, vector<8x128xf32>
    %61 = arith.index_cast %c0_i32_34 : i32 to index
    %c0_44 = arith.constant 0 : index
    %62 = vector.load %arg7[%61, %c0_44] : memref<8x128xi32, #tpu.memory_space<vmem>>, vector<1x128xi32>
    %63 = vector.broadcast %62 : vector<1x128xi32> to vector<8x128xi32>
    %64 = arith.cmpi eq, %4, %63 : vector<8x128xi32>
    %65 = arith.extui %64 : vector<8x128xi1> to vector<8x128xi32>
    %66 = arith.sitofp %65 : vector<8x128xi32> to vector<8x128xf32>
    %67 = arith.index_cast %c0_i32_34 : i32 to index
    %c0_45 = arith.constant 0 : index
    %c0_46 = arith.constant 0 : index
    %68 = vector.load %arg6[%67, %c0_45, %c0_46] : memref<8x8x128xf32, #tpu.memory_space<vmem>>, vector<1x8x128xf32>
    %69 = vector.shape_cast %68 : vector<1x8x128xf32> to vector<8x128xf32>
    %cst_47 = arith.constant dense<0.000000e+00> : vector<8x128xf32>
    %70 = tpu.matmul %2, %34, %cst_47 {dimension_numbers = #tpu.dot_dimension_numbers<[1], [0], [0], [1], [0, 0, 1, 1], [], []>} : vector<8x8xf32>, vector<8x128xf32>, vector<8x128xf32> -> vector<8x128xf32>
    %71 = arith.addf %70, %69 : vector<8x128xf32>
    %72 = arith.mulf %71, %66 : vector<8x128xf32>
    %cst_48 = arith.constant dense<0.000000e+00> : vector<128xf32>
    %73 = vector.multi_reduction <add>, %72, %cst_48 [0] : vector<8x128xf32> to vector<128xf32>
    %74 = vector.shape_cast %73 : vector<128xf32> to vector<1x128xf32>
    %75 = arith.mulf %74, %42 : vector<1x128xf32>
    %76 = arith.addf %33, %75 : vector<1x128xf32>
    %cst_49 = arith.constant 0.000000e+00 : f32
    %77 = vector.broadcast %cst_49 : f32 to vector<1x128xf32>
    %78 = arith.cmpf ogt, %42, %77 : vector<1x128xf32>
    %79 = vector.shape_cast %78 : vector<1x128xi1> to vector<1x128xi1>
    %80 = vector.broadcast %79 : vector<1x128xi1> to vector<8x128xi1>
    %81 = arith.select %80, %66, %35 : vector<8x128xi1>, vector<8x128xf32>
    %c1_i32 = arith.constant 1 : i32
    %82 = arith.index_cast %c1_i32 : i32 to index
    %c0_50 = arith.constant 0 : index
    %83 = vector.load %arg8[%82, %c0_50] : memref<8x128xf32, #tpu.memory_space<vmem>>, vector<1x128xf32>
    %c0_i32_51 = arith.constant 0 : i32
    %84 = arith.cmpi eq, %c1_i32, %c0_i32_51 : i32
    %c0_i32_52 = arith.constant 0 : i32
    %85 = arith.cmpi eq, %arg1, %c0_i32_52 : i32
    %86 = arith.andi %84, %85 : i1
    %cst_53 = arith.constant 0.000000e+00 : f32
    %87 = vector.broadcast %cst_53 : f32 to vector<1x128xf32>
    %88 = arith.select %86, %87, %83 : vector<1x128xf32>
    %cst_54 = arith.constant dense<0.000000e+00> : vector<8x128xf32>
    %89 = tpu.matmul %3, %60, %cst_54 {dimension_numbers = #tpu.dot_dimension_numbers<[1], [0], [0], [1], [0, 0, 1, 1], [], []>} : vector<8x8xf32>, vector<8x128xf32>, vector<8x128xf32> -> vector<8x128xf32>
    %90 = arith.index_cast %c1_i32 : i32 to index
    %c0_55 = arith.constant 0 : index
    %c0_56 = arith.constant 0 : index
    %91 = vector.load %arg15[%90, %c0_55, %c0_56] : memref<8x8x128xf32, #tpu.memory_space<vmem>>, vector<1x8x128xf32>
    %92 = vector.shape_cast %91 : vector<1x8x128xf32> to vector<8x128xf32>
    %93 = arith.mulf %89, %92 : vector<8x128xf32>
    %cst_57 = arith.constant dense<0xFF800000> : vector<128xf32>
    %94 = vector.multi_reduction <maximumf>, %93, %cst_57 [0] : vector<8x128xf32> to vector<128xf32>
    %95 = vector.shape_cast %94 : vector<128xf32> to vector<1x128xf32>
    %96 = tpu.reciprocal %95 {approx = true} : vector<1x128xf32> -> vector<1x128xf32>
    %97 = math.log %96 : vector<1x128xf32>
    %98 = arith.mulf %97, %88 : vector<1x128xf32>
    %99 = arith.subf %53, %98 : vector<1x128xf32>
    %cst_58 = arith.constant 0.000000e+00 : f32
    %100 = vector.broadcast %cst_58 : f32 to vector<1x128xf32>
    %101 = arith.cmpf ogt, %88, %100 : vector<1x128xf32>
    %102 = vector.broadcast %96 : vector<1x128xf32> to vector<8x128xf32>
    %103 = arith.mulf %93, %102 : vector<8x128xf32>
    %104 = vector.shape_cast %101 : vector<1x128xi1> to vector<1x128xi1>
    %105 = vector.broadcast %104 : vector<1x128xi1> to vector<8x128xi1>
    %106 = arith.select %105, %103, %60 : vector<8x128xi1>, vector<8x128xf32>
    %107 = arith.index_cast %c1_i32 : i32 to index
    %c0_59 = arith.constant 0 : index
    %108 = vector.load %arg7[%107, %c0_59] : memref<8x128xi32, #tpu.memory_space<vmem>>, vector<1x128xi32>
    %109 = vector.broadcast %108 : vector<1x128xi32> to vector<8x128xi32>
    %110 = arith.cmpi eq, %4, %109 : vector<8x128xi32>
    %111 = arith.extui %110 : vector<8x128xi1> to vector<8x128xi32>
    %112 = arith.sitofp %111 : vector<8x128xi32> to vector<8x128xf32>
    %113 = arith.index_cast %c1_i32 : i32 to index
    %c0_60 = arith.constant 0 : index
    %c0_61 = arith.constant 0 : index
    %114 = vector.load %arg6[%113, %c0_60, %c0_61] : memref<8x8x128xf32, #tpu.memory_space<vmem>>, vector<1x8x128xf32>
    %115 = vector.shape_cast %114 : vector<1x8x128xf32> to vector<8x128xf32>
    %cst_62 = arith.constant dense<0.000000e+00> : vector<8x128xf32>
    %116 = tpu.matmul %2, %66, %cst_62 {dimension_numbers = #tpu.dot_dimension_numbers<[1], [0], [0], [1], [0, 0, 1, 1], [], []>} : vector<8x8xf32>, vector<8x128xf32>, vector<8x128xf32> -> vector<8x128xf32>
    %117 = arith.addf %116, %115 : vector<8x128xf32>
    %118 = arith.mulf %117, %112 : vector<8x128xf32>
    %cst_63 = arith.constant dense<0.000000e+00> : vector<128xf32>
    %119 = vector.multi_reduction <add>, %118, %cst_63 [0] : vector<8x128xf32> to vector<128xf32>
    %120 = vector.shape_cast %119 : vector<128xf32> to vector<1x128xf32>
    %121 = arith.mulf %120, %88 : vector<1x128xf32>
    %122 = arith.addf %76, %121 : vector<1x128xf32>
    %cst_64 = arith.constant 0.000000e+00 : f32
    %123 = vector.broadcast %cst_64 : f32 to vector<1x128xf32>
    %124 = arith.cmpf ogt, %88, %123 : vector<1x128xf32>
    %125 = vector.shape_cast %124 : vector<1x128xi1> to vector<1x128xi1>
    %126 = vector.broadcast %125 : vector<1x128xi1> to vector<8x128xi1>
    %127 = arith.select %126, %112, %81 : vector<8x128xi1>, vector<8x128xf32>
    %c2_i32 = arith.constant 2 : i32
    %128 = arith.index_cast %c2_i32 : i32 to index
    %c0_65 = arith.constant 0 : index
    %129 = vector.load %arg8[%128, %c0_65] : memref<8x128xf32, #tpu.memory_space<vmem>>, vector<1x128xf32>
    %c0_i32_66 = arith.constant 0 : i32
    %130 = arith.cmpi eq, %c2_i32, %c0_i32_66 : i32
    %c0_i32_67 = arith.constant 0 : i32
    %131 = arith.cmpi eq, %arg1, %c0_i32_67 : i32
    %132 = arith.andi %130, %131 : i1
    %cst_68 = arith.constant 0.000000e+00 : f32
    %133 = vector.broadcast %cst_68 : f32 to vector<1x128xf32>
    %134 = arith.select %132, %133, %129 : vector<1x128xf32>
    %cst_69 = arith.constant dense<0.000000e+00> : vector<8x128xf32>
    %135 = tpu.matmul %3, %106, %cst_69 {dimension_numbers = #tpu.dot_dimension_numbers<[1], [0], [0], [1], [0, 0, 1, 1], [], []>} : vector<8x8xf32>, vector<8x128xf32>, vector<8x128xf32> -> vector<8x128xf32>
    %136 = arith.index_cast %c2_i32 : i32 to index
    %c0_70 = arith.constant 0 : index
    %c0_71 = arith.constant 0 : index
    %137 = vector.load %arg15[%136, %c0_70, %c0_71] : memref<8x8x128xf32, #tpu.memory_space<vmem>>, vector<1x8x128xf32>
    %138 = vector.shape_cast %137 : vector<1x8x128xf32> to vector<8x128xf32>
    %139 = arith.mulf %135, %138 : vector<8x128xf32>
    %cst_72 = arith.constant dense<0xFF800000> : vector<128xf32>
    %140 = vector.multi_reduction <maximumf>, %139, %cst_72 [0] : vector<8x128xf32> to vector<128xf32>
    %141 = vector.shape_cast %140 : vector<128xf32> to vector<1x128xf32>
    %142 = tpu.reciprocal %141 {approx = true} : vector<1x128xf32> -> vector<1x128xf32>
    %143 = math.log %142 : vector<1x128xf32>
    %144 = arith.mulf %143, %134 : vector<1x128xf32>
    %145 = arith.subf %99, %144 : vector<1x128xf32>
    %cst_73 = arith.constant 0.000000e+00 : f32
    %146 = vector.broadcast %cst_73 : f32 to vector<1x128xf32>
    %147 = arith.cmpf ogt, %134, %146 : vector<1x128xf32>
    %148 = vector.broadcast %142 : vector<1x128xf32> to vector<8x128xf32>
    %149 = arith.mulf %139, %148 : vector<8x128xf32>
    %150 = vector.shape_cast %147 : vector<1x128xi1> to vector<1x128xi1>
    %151 = vector.broadcast %150 : vector<1x128xi1> to vector<8x128xi1>
    %152 = arith.select %151, %149, %106 : vector<8x128xi1>, vector<8x128xf32>
    %153 = arith.index_cast %c2_i32 : i32 to index
    %c0_74 = arith.constant 0 : index
    %154 = vector.load %arg7[%153, %c0_74] : memref<8x128xi32, #tpu.memory_space<vmem>>, vector<1x128xi32>
    %155 = vector.broadcast %154 : vector<1x128xi32> to vector<8x128xi32>
    %156 = arith.cmpi eq, %4, %155 : vector<8x128xi32>
    %157 = arith.extui %156 : vector<8x128xi1> to vector<8x128xi32>
    %158 = arith.sitofp %157 : vector<8x128xi32> to vector<8x128xf32>
    %159 = arith.index_cast %c2_i32 : i32 to index
    %c0_75 = arith.constant 0 : index
    %c0_76 = arith.constant 0 : index
    %160 = vector.load %arg6[%159, %c0_75, %c0_76] : memref<8x8x128xf32, #tpu.memory_space<vmem>>, vector<1x8x128xf32>
    %161 = vector.shape_cast %160 : vector<1x8x128xf32> to vector<8x128xf32>
    %cst_77 = arith.constant dense<0.000000e+00> : vector<8x128xf32>
    %162 = tpu.matmul %2, %112, %cst_77 {dimension_numbers = #tpu.dot_dimension_numbers<[1], [0], [0], [1], [0, 0, 1, 1], [], []>} : vector<8x8xf32>, vector<8x128xf32>, vector<8x128xf32> -> vector<8x128xf32>
    %163 = arith.addf %162, %161 : vector<8x128xf32>
    %164 = arith.mulf %163, %158 : vector<8x128xf32>
    %cst_78 = arith.constant dense<0.000000e+00> : vector<128xf32>
    %165 = vector.multi_reduction <add>, %164, %cst_78 [0] : vector<8x128xf32> to vector<128xf32>
    %166 = vector.shape_cast %165 : vector<128xf32> to vector<1x128xf32>
    %167 = arith.mulf %166, %134 : vector<1x128xf32>
    %168 = arith.addf %122, %167 : vector<1x128xf32>
    %cst_79 = arith.constant 0.000000e+00 : f32
    %169 = vector.broadcast %cst_79 : f32 to vector<1x128xf32>
    %170 = arith.cmpf ogt, %134, %169 : vector<1x128xf32>
    %171 = vector.shape_cast %170 : vector<1x128xi1> to vector<1x128xi1>
    %172 = vector.broadcast %171 : vector<1x128xi1> to vector<8x128xi1>
    %173 = arith.select %172, %158, %127 : vector<8x128xi1>, vector<8x128xf32>
    %c3_i32 = arith.constant 3 : i32
    %174 = arith.index_cast %c3_i32 : i32 to index
    %c0_80 = arith.constant 0 : index
    %175 = vector.load %arg8[%174, %c0_80] : memref<8x128xf32, #tpu.memory_space<vmem>>, vector<1x128xf32>
    %c0_i32_81 = arith.constant 0 : i32
    %176 = arith.cmpi eq, %c3_i32, %c0_i32_81 : i32
    %c0_i32_82 = arith.constant 0 : i32
    %177 = arith.cmpi eq, %arg1, %c0_i32_82 : i32
    %178 = arith.andi %176, %177 : i1
    %cst_83 = arith.constant 0.000000e+00 : f32
    %179 = vector.broadcast %cst_83 : f32 to vector<1x128xf32>
    %180 = arith.select %178, %179, %175 : vector<1x128xf32>
    %cst_84 = arith.constant dense<0.000000e+00> : vector<8x128xf32>
    %181 = tpu.matmul %3, %152, %cst_84 {dimension_numbers = #tpu.dot_dimension_numbers<[1], [0], [0], [1], [0, 0, 1, 1], [], []>} : vector<8x8xf32>, vector<8x128xf32>, vector<8x128xf32> -> vector<8x128xf32>
    %182 = arith.index_cast %c3_i32 : i32 to index
    %c0_85 = arith.constant 0 : index
    %c0_86 = arith.constant 0 : index
    %183 = vector.load %arg15[%182, %c0_85, %c0_86] : memref<8x8x128xf32, #tpu.memory_space<vmem>>, vector<1x8x128xf32>
    %184 = vector.shape_cast %183 : vector<1x8x128xf32> to vector<8x128xf32>
    %185 = arith.mulf %181, %184 : vector<8x128xf32>
    %cst_87 = arith.constant dense<0xFF800000> : vector<128xf32>
    %186 = vector.multi_reduction <maximumf>, %185, %cst_87 [0] : vector<8x128xf32> to vector<128xf32>
    %187 = vector.shape_cast %186 : vector<128xf32> to vector<1x128xf32>
    %188 = tpu.reciprocal %187 {approx = true} : vector<1x128xf32> -> vector<1x128xf32>
    %189 = math.log %188 : vector<1x128xf32>
    %190 = arith.mulf %189, %180 : vector<1x128xf32>
    %191 = arith.subf %145, %190 : vector<1x128xf32>
    %cst_88 = arith.constant 0.000000e+00 : f32
    %192 = vector.broadcast %cst_88 : f32 to vector<1x128xf32>
    %193 = arith.cmpf ogt, %180, %192 : vector<1x128xf32>
    %194 = vector.broadcast %188 : vector<1x128xf32> to vector<8x128xf32>
    %195 = arith.mulf %185, %194 : vector<8x128xf32>
    %196 = vector.shape_cast %193 : vector<1x128xi1> to vector<1x128xi1>
    %197 = vector.broadcast %196 : vector<1x128xi1> to vector<8x128xi1>
    %198 = arith.select %197, %195, %152 : vector<8x128xi1>, vector<8x128xf32>
    %199 = arith.index_cast %c3_i32 : i32 to index
    %c0_89 = arith.constant 0 : index
    %200 = vector.load %arg7[%199, %c0_89] : memref<8x128xi32, #tpu.memory_space<vmem>>, vector<1x128xi32>
    %201 = vector.broadcast %200 : vector<1x128xi32> to vector<8x128xi32>
    %202 = arith.cmpi eq, %4, %201 : vector<8x128xi32>
    %203 = arith.extui %202 : vector<8x128xi1> to vector<8x128xi32>
    %204 = arith.sitofp %203 : vector<8x128xi32> to vector<8x128xf32>
    %205 = arith.index_cast %c3_i32 : i32 to index
    %c0_90 = arith.constant 0 : index
    %c0_91 = arith.constant 0 : index
    %206 = vector.load %arg6[%205, %c0_90, %c0_91] : memref<8x8x128xf32, #tpu.memory_space<vmem>>, vector<1x8x128xf32>
    %207 = vector.shape_cast %206 : vector<1x8x128xf32> to vector<8x128xf32>
    %cst_92 = arith.constant dense<0.000000e+00> : vector<8x128xf32>
    %208 = tpu.matmul %2, %158, %cst_92 {dimension_numbers = #tpu.dot_dimension_numbers<[1], [0], [0], [1], [0, 0, 1, 1], [], []>} : vector<8x8xf32>, vector<8x128xf32>, vector<8x128xf32> -> vector<8x128xf32>
    %209 = arith.addf %208, %207 : vector<8x128xf32>
    %210 = arith.mulf %209, %204 : vector<8x128xf32>
    %cst_93 = arith.constant dense<0.000000e+00> : vector<128xf32>
    %211 = vector.multi_reduction <add>, %210, %cst_93 [0] : vector<8x128xf32> to vector<128xf32>
    %212 = vector.shape_cast %211 : vector<128xf32> to vector<1x128xf32>
    %213 = arith.mulf %212, %180 : vector<1x128xf32>
    %214 = arith.addf %168, %213 : vector<1x128xf32>
    %cst_94 = arith.constant 0.000000e+00 : f32
    %215 = vector.broadcast %cst_94 : f32 to vector<1x128xf32>
    %216 = arith.cmpf ogt, %180, %215 : vector<1x128xf32>
    %217 = vector.shape_cast %216 : vector<1x128xi1> to vector<1x128xi1>
    %218 = vector.broadcast %217 : vector<1x128xi1> to vector<8x128xi1>
    %219 = arith.select %218, %204, %173 : vector<8x128xi1>, vector<8x128xf32>
    %c4_i32 = arith.constant 4 : i32
    %220 = arith.index_cast %c4_i32 : i32 to index
    %c0_95 = arith.constant 0 : index
    %221 = vector.load %arg8[%220, %c0_95] : memref<8x128xf32, #tpu.memory_space<vmem>>, vector<1x128xf32>
    %c0_i32_96 = arith.constant 0 : i32
    %222 = arith.cmpi eq, %c4_i32, %c0_i32_96 : i32
    %c0_i32_97 = arith.constant 0 : i32
    %223 = arith.cmpi eq, %arg1, %c0_i32_97 : i32
    %224 = arith.andi %222, %223 : i1
    %cst_98 = arith.constant 0.000000e+00 : f32
    %225 = vector.broadcast %cst_98 : f32 to vector<1x128xf32>
    %226 = arith.select %224, %225, %221 : vector<1x128xf32>
    %cst_99 = arith.constant dense<0.000000e+00> : vector<8x128xf32>
    %227 = tpu.matmul %3, %198, %cst_99 {dimension_numbers = #tpu.dot_dimension_numbers<[1], [0], [0], [1], [0, 0, 1, 1], [], []>} : vector<8x8xf32>, vector<8x128xf32>, vector<8x128xf32> -> vector<8x128xf32>
    %228 = arith.index_cast %c4_i32 : i32 to index
    %c0_100 = arith.constant 0 : index
    %c0_101 = arith.constant 0 : index
    %229 = vector.load %arg15[%228, %c0_100, %c0_101] : memref<8x8x128xf32, #tpu.memory_space<vmem>>, vector<1x8x128xf32>
    %230 = vector.shape_cast %229 : vector<1x8x128xf32> to vector<8x128xf32>
    %231 = arith.mulf %227, %230 : vector<8x128xf32>
    %cst_102 = arith.constant dense<0xFF800000> : vector<128xf32>
    %232 = vector.multi_reduction <maximumf>, %231, %cst_102 [0] : vector<8x128xf32> to vector<128xf32>
    %233 = vector.shape_cast %232 : vector<128xf32> to vector<1x128xf32>
    %234 = tpu.reciprocal %233 {approx = true} : vector<1x128xf32> -> vector<1x128xf32>
    %235 = math.log %234 : vector<1x128xf32>
    %236 = arith.mulf %235, %226 : vector<1x128xf32>
    %237 = arith.subf %191, %236 : vector<1x128xf32>
    %cst_103 = arith.constant 0.000000e+00 : f32
    %238 = vector.broadcast %cst_103 : f32 to vector<1x128xf32>
    %239 = arith.cmpf ogt, %226, %238 : vector<1x128xf32>
    %240 = vector.broadcast %234 : vector<1x128xf32> to vector<8x128xf32>
    %241 = arith.mulf %231, %240 : vector<8x128xf32>
    %242 = vector.shape_cast %239 : vector<1x128xi1> to vector<1x128xi1>
    %243 = vector.broadcast %242 : vector<1x128xi1> to vector<8x128xi1>
    %244 = arith.select %243, %241, %198 : vector<8x128xi1>, vector<8x128xf32>
    %245 = arith.index_cast %c4_i32 : i32 to index
    %c0_104 = arith.constant 0 : index
    %246 = vector.load %arg7[%245, %c0_104] : memref<8x128xi32, #tpu.memory_space<vmem>>, vector<1x128xi32>
    %247 = vector.broadcast %246 : vector<1x128xi32> to vector<8x128xi32>
    %248 = arith.cmpi eq, %4, %247 : vector<8x128xi32>
    %249 = arith.extui %248 : vector<8x128xi1> to vector<8x128xi32>
    %250 = arith.sitofp %249 : vector<8x128xi32> to vector<8x128xf32>
    %251 = arith.index_cast %c4_i32 : i32 to index
    %c0_105 = arith.constant 0 : index
    %c0_106 = arith.constant 0 : index
    %252 = vector.load %arg6[%251, %c0_105, %c0_106] : memref<8x8x128xf32, #tpu.memory_space<vmem>>, vector<1x8x128xf32>
    %253 = vector.shape_cast %252 : vector<1x8x128xf32> to vector<8x128xf32>
    %cst_107 = arith.constant dense<0.000000e+00> : vector<8x128xf32>
    %254 = tpu.matmul %2, %204, %cst_107 {dimension_numbers = #tpu.dot_dimension_numbers<[1], [0], [0], [1], [0, 0, 1, 1], [], []>} : vector<8x8xf32>, vector<8x128xf32>, vector<8x128xf32> -> vector<8x128xf32>
    %255 = arith.addf %254, %253 : vector<8x128xf32>
    %256 = arith.mulf %255, %250 : vector<8x128xf32>
    %cst_108 = arith.constant dense<0.000000e+00> : vector<128xf32>
    %257 = vector.multi_reduction <add>, %256, %cst_108 [0] : vector<8x128xf32> to vector<128xf32>
    %258 = vector.shape_cast %257 : vector<128xf32> to vector<1x128xf32>
    %259 = arith.mulf %258, %226 : vector<1x128xf32>
    %260 = arith.addf %214, %259 : vector<1x128xf32>
    %cst_109 = arith.constant 0.000000e+00 : f32
    %261 = vector.broadcast %cst_109 : f32 to vector<1x128xf32>
    %262 = arith.cmpf ogt, %226, %261 : vector<1x128xf32>
    %263 = vector.shape_cast %262 : vector<1x128xi1> to vector<1x128xi1>
    %264 = vector.broadcast %263 : vector<1x128xi1> to vector<8x128xi1>
    %265 = arith.select %264, %250, %219 : vector<8x128xi1>, vector<8x128xf32>
    %c5_i32 = arith.constant 5 : i32
    %266 = arith.index_cast %c5_i32 : i32 to index
    %c0_110 = arith.constant 0 : index
    %267 = vector.load %arg8[%266, %c0_110] : memref<8x128xf32, #tpu.memory_space<vmem>>, vector<1x128xf32>
    %c0_i32_111 = arith.constant 0 : i32
    %268 = arith.cmpi eq, %c5_i32, %c0_i32_111 : i32
    %c0_i32_112 = arith.constant 0 : i32
    %269 = arith.cmpi eq, %arg1, %c0_i32_112 : i32
    %270 = arith.andi %268, %269 : i1
    %cst_113 = arith.constant 0.000000e+00 : f32
    %271 = vector.broadcast %cst_113 : f32 to vector<1x128xf32>
    %272 = arith.select %270, %271, %267 : vector<1x128xf32>
    %cst_114 = arith.constant dense<0.000000e+00> : vector<8x128xf32>
    %273 = tpu.matmul %3, %244, %cst_114 {dimension_numbers = #tpu.dot_dimension_numbers<[1], [0], [0], [1], [0, 0, 1, 1], [], []>} : vector<8x8xf32>, vector<8x128xf32>, vector<8x128xf32> -> vector<8x128xf32>
    %274 = arith.index_cast %c5_i32 : i32 to index
    %c0_115 = arith.constant 0 : index
    %c0_116 = arith.constant 0 : index
    %275 = vector.load %arg15[%274, %c0_115, %c0_116] : memref<8x8x128xf32, #tpu.memory_space<vmem>>, vector<1x8x128xf32>
    %276 = vector.shape_cast %275 : vector<1x8x128xf32> to vector<8x128xf32>
    %277 = arith.mulf %273, %276 : vector<8x128xf32>
    %cst_117 = arith.constant dense<0xFF800000> : vector<128xf32>
    %278 = vector.multi_reduction <maximumf>, %277, %cst_117 [0] : vector<8x128xf32> to vector<128xf32>
    %279 = vector.shape_cast %278 : vector<128xf32> to vector<1x128xf32>
    %280 = tpu.reciprocal %279 {approx = true} : vector<1x128xf32> -> vector<1x128xf32>
    %281 = math.log %280 : vector<1x128xf32>
    %282 = arith.mulf %281, %272 : vector<1x128xf32>
    %283 = arith.subf %237, %282 : vector<1x128xf32>
    %cst_118 = arith.constant 0.000000e+00 : f32
    %284 = vector.broadcast %cst_118 : f32 to vector<1x128xf32>
    %285 = arith.cmpf ogt, %272, %284 : vector<1x128xf32>
    %286 = vector.broadcast %280 : vector<1x128xf32> to vector<8x128xf32>
    %287 = arith.mulf %277, %286 : vector<8x128xf32>
    %288 = vector.shape_cast %285 : vector<1x128xi1> to vector<1x128xi1>
    %289 = vector.broadcast %288 : vector<1x128xi1> to vector<8x128xi1>
    %290 = arith.select %289, %287, %244 : vector<8x128xi1>, vector<8x128xf32>
    %291 = arith.index_cast %c5_i32 : i32 to index
    %c0_119 = arith.constant 0 : index
    %292 = vector.load %arg7[%291, %c0_119] : memref<8x128xi32, #tpu.memory_space<vmem>>, vector<1x128xi32>
    %293 = vector.broadcast %292 : vector<1x128xi32> to vector<8x128xi32>
    %294 = arith.cmpi eq, %4, %293 : vector<8x128xi32>
    %295 = arith.extui %294 : vector<8x128xi1> to vector<8x128xi32>
    %296 = arith.sitofp %295 : vector<8x128xi32> to vector<8x128xf32>
    %297 = arith.index_cast %c5_i32 : i32 to index
    %c0_120 = arith.constant 0 : index
    %c0_121 = arith.constant 0 : index
    %298 = vector.load %arg6[%297, %c0_120, %c0_121] : memref<8x8x128xf32, #tpu.memory_space<vmem>>, vector<1x8x128xf32>
    %299 = vector.shape_cast %298 : vector<1x8x128xf32> to vector<8x128xf32>
    %cst_122 = arith.constant dense<0.000000e+00> : vector<8x128xf32>
    %300 = tpu.matmul %2, %250, %cst_122 {dimension_numbers = #tpu.dot_dimension_numbers<[1], [0], [0], [1], [0, 0, 1, 1], [], []>} : vector<8x8xf32>, vector<8x128xf32>, vector<8x128xf32> -> vector<8x128xf32>
    %301 = arith.addf %300, %299 : vector<8x128xf32>
    %302 = arith.mulf %301, %296 : vector<8x128xf32>
    %cst_123 = arith.constant dense<0.000000e+00> : vector<128xf32>
    %303 = vector.multi_reduction <add>, %302, %cst_123 [0] : vector<8x128xf32> to vector<128xf32>
    %304 = vector.shape_cast %303 : vector<128xf32> to vector<1x128xf32>
    %305 = arith.mulf %304, %272 : vector<1x128xf32>
    %306 = arith.addf %260, %305 : vector<1x128xf32>
    %cst_124 = arith.constant 0.000000e+00 : f32
    %307 = vector.broadcast %cst_124 : f32 to vector<1x128xf32>
    %308 = arith.cmpf ogt, %272, %307 : vector<1x128xf32>
    %309 = vector.shape_cast %308 : vector<1x128xi1> to vector<1x128xi1>
    %310 = vector.broadcast %309 : vector<1x128xi1> to vector<8x128xi1>
    %311 = arith.select %310, %296, %265 : vector<8x128xi1>, vector<8x128xf32>
    %c6_i32 = arith.constant 6 : i32
    %312 = arith.index_cast %c6_i32 : i32 to index
    %c0_125 = arith.constant 0 : index
    %313 = vector.load %arg8[%312, %c0_125] : memref<8x128xf32, #tpu.memory_space<vmem>>, vector<1x128xf32>
    %c0_i32_126 = arith.constant 0 : i32
    %314 = arith.cmpi eq, %c6_i32, %c0_i32_126 : i32
    %c0_i32_127 = arith.constant 0 : i32
    %315 = arith.cmpi eq, %arg1, %c0_i32_127 : i32
    %316 = arith.andi %314, %315 : i1
    %cst_128 = arith.constant 0.000000e+00 : f32
    %317 = vector.broadcast %cst_128 : f32 to vector<1x128xf32>
    %318 = arith.select %316, %317, %313 : vector<1x128xf32>
    %cst_129 = arith.constant dense<0.000000e+00> : vector<8x128xf32>
    %319 = tpu.matmul %3, %290, %cst_129 {dimension_numbers = #tpu.dot_dimension_numbers<[1], [0], [0], [1], [0, 0, 1, 1], [], []>} : vector<8x8xf32>, vector<8x128xf32>, vector<8x128xf32> -> vector<8x128xf32>
    %320 = arith.index_cast %c6_i32 : i32 to index
    %c0_130 = arith.constant 0 : index
    %c0_131 = arith.constant 0 : index
    %321 = vector.load %arg15[%320, %c0_130, %c0_131] : memref<8x8x128xf32, #tpu.memory_space<vmem>>, vector<1x8x128xf32>
    %322 = vector.shape_cast %321 : vector<1x8x128xf32> to vector<8x128xf32>
    %323 = arith.mulf %319, %322 : vector<8x128xf32>
    %cst_132 = arith.constant dense<0xFF800000> : vector<128xf32>
    %324 = vector.multi_reduction <maximumf>, %323, %cst_132 [0] : vector<8x128xf32> to vector<128xf32>
    %325 = vector.shape_cast %324 : vector<128xf32> to vector<1x128xf32>
    %326 = tpu.reciprocal %325 {approx = true} : vector<1x128xf32> -> vector<1x128xf32>
    %327 = math.log %326 : vector<1x128xf32>
    %328 = arith.mulf %327, %318 : vector<1x128xf32>
    %329 = arith.subf %283, %328 : vector<1x128xf32>
    %cst_133 = arith.constant 0.000000e+00 : f32
    %330 = vector.broadcast %cst_133 : f32 to vector<1x128xf32>
    %331 = arith.cmpf ogt, %318, %330 : vector<1x128xf32>
    %332 = vector.broadcast %326 : vector<1x128xf32> to vector<8x128xf32>
    %333 = arith.mulf %323, %332 : vector<8x128xf32>
    %334 = vector.shape_cast %331 : vector<1x128xi1> to vector<1x128xi1>
    %335 = vector.broadcast %334 : vector<1x128xi1> to vector<8x128xi1>
    %336 = arith.select %335, %333, %290 : vector<8x128xi1>, vector<8x128xf32>
    %337 = arith.index_cast %c6_i32 : i32 to index
    %c0_134 = arith.constant 0 : index
    %338 = vector.load %arg7[%337, %c0_134] : memref<8x128xi32, #tpu.memory_space<vmem>>, vector<1x128xi32>
    %339 = vector.broadcast %338 : vector<1x128xi32> to vector<8x128xi32>
    %340 = arith.cmpi eq, %4, %339 : vector<8x128xi32>
    %341 = arith.extui %340 : vector<8x128xi1> to vector<8x128xi32>
    %342 = arith.sitofp %341 : vector<8x128xi32> to vector<8x128xf32>
    %343 = arith.index_cast %c6_i32 : i32 to index
    %c0_135 = arith.constant 0 : index
    %c0_136 = arith.constant 0 : index
    %344 = vector.load %arg6[%343, %c0_135, %c0_136] : memref<8x8x128xf32, #tpu.memory_space<vmem>>, vector<1x8x128xf32>
    %345 = vector.shape_cast %344 : vector<1x8x128xf32> to vector<8x128xf32>
    %cst_137 = arith.constant dense<0.000000e+00> : vector<8x128xf32>
    %346 = tpu.matmul %2, %296, %cst_137 {dimension_numbers = #tpu.dot_dimension_numbers<[1], [0], [0], [1], [0, 0, 1, 1], [], []>} : vector<8x8xf32>, vector<8x128xf32>, vector<8x128xf32> -> vector<8x128xf32>
    %347 = arith.addf %346, %345 : vector<8x128xf32>
    %348 = arith.mulf %347, %342 : vector<8x128xf32>
    %cst_138 = arith.constant dense<0.000000e+00> : vector<128xf32>
    %349 = vector.multi_reduction <add>, %348, %cst_138 [0] : vector<8x128xf32> to vector<128xf32>
    %350 = vector.shape_cast %349 : vector<128xf32> to vector<1x128xf32>
    %351 = arith.mulf %350, %318 : vector<1x128xf32>
    %352 = arith.addf %306, %351 : vector<1x128xf32>
    %cst_139 = arith.constant 0.000000e+00 : f32
    %353 = vector.broadcast %cst_139 : f32 to vector<1x128xf32>
    %354 = arith.cmpf ogt, %318, %353 : vector<1x128xf32>
    %355 = vector.shape_cast %354 : vector<1x128xi1> to vector<1x128xi1>
    %356 = vector.broadcast %355 : vector<1x128xi1> to vector<8x128xi1>
    %357 = arith.select %356, %342, %311 : vector<8x128xi1>, vector<8x128xf32>
    %c7_i32 = arith.constant 7 : i32
    %358 = arith.index_cast %c7_i32 : i32 to index
    %c0_140 = arith.constant 0 : index
    %359 = vector.load %arg8[%358, %c0_140] : memref<8x128xf32, #tpu.memory_space<vmem>>, vector<1x128xf32>
    %c0_i32_141 = arith.constant 0 : i32
    %360 = arith.cmpi eq, %c7_i32, %c0_i32_141 : i32
    %c0_i32_142 = arith.constant 0 : i32
    %361 = arith.cmpi eq, %arg1, %c0_i32_142 : i32
    %362 = arith.andi %360, %361 : i1
    %cst_143 = arith.constant 0.000000e+00 : f32
    %363 = vector.broadcast %cst_143 : f32 to vector<1x128xf32>
    %364 = arith.select %362, %363, %359 : vector<1x128xf32>
    %cst_144 = arith.constant dense<0.000000e+00> : vector<8x128xf32>
    %365 = tpu.matmul %3, %336, %cst_144 {dimension_numbers = #tpu.dot_dimension_numbers<[1], [0], [0], [1], [0, 0, 1, 1], [], []>} : vector<8x8xf32>, vector<8x128xf32>, vector<8x128xf32> -> vector<8x128xf32>
    %366 = arith.index_cast %c7_i32 : i32 to index
    %c0_145 = arith.constant 0 : index
    %c0_146 = arith.constant 0 : index
    %367 = vector.load %arg15[%366, %c0_145, %c0_146] : memref<8x8x128xf32, #tpu.memory_space<vmem>>, vector<1x8x128xf32>
    %368 = vector.shape_cast %367 : vector<1x8x128xf32> to vector<8x128xf32>
    %369 = arith.mulf %365, %368 : vector<8x128xf32>
    %cst_147 = arith.constant dense<0xFF800000> : vector<128xf32>
    %370 = vector.multi_reduction <maximumf>, %369, %cst_147 [0] : vector<8x128xf32> to vector<128xf32>
    %371 = vector.shape_cast %370 : vector<128xf32> to vector<1x128xf32>
    %372 = tpu.reciprocal %371 {approx = true} : vector<1x128xf32> -> vector<1x128xf32>
    %373 = math.log %372 : vector<1x128xf32>
    %374 = arith.mulf %373, %364 : vector<1x128xf32>
    %375 = arith.subf %329, %374 : vector<1x128xf32>
    %cst_148 = arith.constant 0.000000e+00 : f32
    %376 = vector.broadcast %cst_148 : f32 to vector<1x128xf32>
    %377 = arith.cmpf ogt, %364, %376 : vector<1x128xf32>
    %378 = vector.broadcast %372 : vector<1x128xf32> to vector<8x128xf32>
    %379 = arith.mulf %369, %378 : vector<8x128xf32>
    %380 = vector.shape_cast %377 : vector<1x128xi1> to vector<1x128xi1>
    %381 = vector.broadcast %380 : vector<1x128xi1> to vector<8x128xi1>
    %382 = arith.select %381, %379, %336 : vector<8x128xi1>, vector<8x128xf32>
    %383 = arith.index_cast %c7_i32 : i32 to index
    %c0_149 = arith.constant 0 : index
    %384 = vector.load %arg7[%383, %c0_149] : memref<8x128xi32, #tpu.memory_space<vmem>>, vector<1x128xi32>
    %385 = vector.broadcast %384 : vector<1x128xi32> to vector<8x128xi32>
    %386 = arith.cmpi eq, %4, %385 : vector<8x128xi32>
    %387 = arith.extui %386 : vector<8x128xi1> to vector<8x128xi32>
    %388 = arith.sitofp %387 : vector<8x128xi32> to vector<8x128xf32>
    %389 = arith.index_cast %c7_i32 : i32 to index
    %c0_150 = arith.constant 0 : index
    %c0_151 = arith.constant 0 : index
    %390 = vector.load %arg6[%389, %c0_150, %c0_151] : memref<8x8x128xf32, #tpu.memory_space<vmem>>, vector<1x8x128xf32>
    %391 = vector.shape_cast %390 : vector<1x8x128xf32> to vector<8x128xf32>
    %cst_152 = arith.constant dense<0.000000e+00> : vector<8x128xf32>
    %392 = tpu.matmul %2, %342, %cst_152 {dimension_numbers = #tpu.dot_dimension_numbers<[1], [0], [0], [1], [0, 0, 1, 1], [], []>} : vector<8x8xf32>, vector<8x128xf32>, vector<8x128xf32> -> vector<8x128xf32>
    %393 = arith.addf %392, %391 : vector<8x128xf32>
    %394 = arith.mulf %393, %388 : vector<8x128xf32>
    %cst_153 = arith.constant dense<0.000000e+00> : vector<128xf32>
    %395 = vector.multi_reduction <add>, %394, %cst_153 [0] : vector<8x128xf32> to vector<128xf32>
    %396 = vector.shape_cast %395 : vector<128xf32> to vector<1x128xf32>
    %397 = arith.mulf %396, %364 : vector<1x128xf32>
    %398 = arith.addf %352, %397 : vector<1x128xf32>
    %cst_154 = arith.constant 0.000000e+00 : f32
    %399 = vector.broadcast %cst_154 : f32 to vector<1x128xf32>
    %400 = arith.cmpf ogt, %364, %399 : vector<1x128xf32>
    %401 = vector.shape_cast %400 : vector<1x128xi1> to vector<1x128xi1>
    %402 = vector.broadcast %401 : vector<1x128xi1> to vector<8x128xi1>
    %403 = arith.select %402, %388, %357 : vector<8x128xi1>, vector<8x128xf32>
    %c8_i32 = arith.constant 8 : i32
    %c0_155 = arith.constant 0 : index
    %c0_156 = arith.constant 0 : index
    %404 = vector.load %arg10[%c0_155, %c0_156] : memref<8x128xf32, #tpu.memory_space<vmem>>, vector<8x128xf32>
    tpu.vector_store %arg10[%c0_155, %c0_156], %382 {strides = array<i32>} : memref<8x128xf32, #tpu.memory_space<vmem>>, vector<8x128xf32>,
    %c0_157 = arith.constant 0 : index
    %c0_158 = arith.constant 0 : index
    %405 = vector.load %arg11[%c0_157, %c0_158] : memref<1x128xf32, #tpu.memory_space<vmem>>, vector<1x128xf32>
    tpu.vector_store %arg11[%c0_157, %c0_158], %375 {strides = array<i32>} : memref<1x128xf32, #tpu.memory_space<vmem>>, vector<1x128xf32>,
    %c0_159 = arith.constant 0 : index
    %c0_160 = arith.constant 0 : index
    %406 = vector.load %arg12[%c0_159, %c0_160] : memref<1x128xf32, #tpu.memory_space<vmem>>, vector<1x128xf32>
    tpu.vector_store %arg12[%c0_159, %c0_160], %398 {strides = array<i32>} : memref<1x128xf32, #tpu.memory_space<vmem>>, vector<1x128xf32>,
    %c0_161 = arith.constant 0 : index
    %c0_162 = arith.constant 0 : index
    %407 = vector.load %arg13[%c0_161, %c0_162] : memref<8x128xf32, #tpu.memory_space<vmem>>, vector<8x128xf32>
    tpu.vector_store %arg13[%c0_161, %c0_162], %388 {strides = array<i32>} : memref<8x128xf32, #tpu.memory_space<vmem>>, vector<8x128xf32>,
    %c0_163 = arith.constant 0 : index
    %c0_164 = arith.constant 0 : index
    %408 = vector.load %arg14[%c0_163, %c0_164] : memref<8x128xf32, #tpu.memory_space<vmem>>, vector<8x128xf32>
    tpu.vector_store %arg14[%c0_163, %c0_164], %403 {strides = array<i32>} : memref<8x128xf32, #tpu.memory_space<vmem>>, vector<8x128xf32>,
    %c0_i32_165 = arith.constant 0 : i32
    %409 = arith.cmpi eq, %arg1, %c0_i32_165 : i32
    %410 = arith.extui %409 : i1 to i32
    %c0_i32_166 = arith.constant 0 : i32
    %411 = arith.cmpi ne, %410, %c0_i32_166 : i32
    scf.if %411 {
      %412 = math.exp %1 : vector<8x1xf32>
      %413 = vector.broadcast %412 : vector<8x1xf32> to vector<8x128xf32>
      %414 = arith.mulf %382, %413 : vector<8x128xf32>
      %cst_167 = arith.constant dense<0.000000e+00> : vector<128xf32>
      %415 = vector.multi_reduction <add>, %414, %cst_167 [0] : vector<8x128xf32> to vector<128xf32>
      %416 = vector.shape_cast %415 : vector<128xf32> to vector<1x128xf32>
      %417 = math.log %416 : vector<1x128xf32>
      %418 = arith.addf %417, %375 : vector<1x128xf32>
      %419 = vector.broadcast %1 : vector<8x1xf32> to vector<8x128xf32>
      %420 = arith.mulf %419, %403 : vector<8x128xf32>
      %cst_168 = arith.constant dense<0.000000e+00> : vector<128xf32>
      %421 = vector.multi_reduction <add>, %420, %cst_168 [0] : vector<8x128xf32> to vector<128xf32>
      %422 = vector.shape_cast %421 : vector<128xf32> to vector<1x128xf32>
      %423 = arith.addf %398, %422 : vector<1x128xf32>
      %424 = arith.subf %418, %423 : vector<1x128xf32>
      %c0_169 = arith.constant 0 : index
      %c0_170 = arith.constant 0 : index
      %425 = vector.load %arg9[%c0_169, %c0_170] : memref<1x128xf32, #tpu.memory_space<vmem>>, vector<1x128xf32>
      tpu.vector_store %arg9[%c0_169, %c0_170], %424 {strides = array<i32>} : memref<1x128xf32, #tpu.memory_space<vmem>>, vector<1x128xf32>,
    } else {
    }
    return
  }
  func.func @transform_0(%arg0: i32, %arg1: i32) -> (i32, i32) {
    %c0_i32 = arith.constant 0 : i32
    %c0_i32_0 = arith.constant 0 : i32
    %c0_i32_1 = arith.constant 0 : i32
    return %c0_i32, %c0_i32_0 : i32, i32
  }
  func.func @transform_1(%arg0: i32, %arg1: i32) -> (i32, i32) {
    %c0_i32 = arith.constant 0 : i32
    %c0_i32_0 = arith.constant 0 : i32
    %c0_i32_1 = arith.constant 0 : i32
    return %c0_i32, %c0_i32_0 : i32, i32
  }
  func.func @transform_2(%arg0: i32, %arg1: i32) -> (i32, i32) {
    %c0_i32 = arith.constant 0 : i32
    %c0_i32_0 = arith.constant 0 : i32
    %c0_i32_1 = arith.constant 0 : i32
    return %c0_i32, %c0_i32_0 : i32, i32
  }
  func.func @transform_3(%arg0: i32, %arg1: i32) -> (i32, i32) {
    %c0_i32 = arith.constant 0 : i32
    %c0_i32_0 = arith.constant 0 : i32
    %c0_i32_1 = arith.constant 0 : i32
    return %c0_i32, %c0_i32_0 : i32, i32
  }
  func.func @transform_4(%arg0: i32, %arg1: i32) -> (i32, i32, i32) {
    %c0_i32 = arith.constant 0 : i32
    %c0_i32_0 = arith.constant 0 : i32
    return %arg1, %c0_i32, %arg0 : i32, i32, i32
  }
  func.func @transform_5(%arg0: i32, %arg1: i32) -> (i32, i32) {
    %c0_i32 = arith.constant 0 : i32
    return %arg1, %arg0 : i32, i32
  }
  func.func @transform_6(%arg0: i32, %arg1: i32) -> (i32, i32) {
    %c0_i32 = arith.constant 0 : i32
    return %arg1, %arg0 : i32, i32
  }
  func.func @transform_7(%arg0: i32, %arg1: i32) -> (i32, i32) {
    %c0_i32 = arith.constant 0 : i32
    %c0_i32_0 = arith.constant 0 : i32
    return %c0_i32, %arg0 : i32, i32
  }
}

</mosaic_0001>

<llo_original>
// kernel: tpu_custom_call.1
$region0: #{tpu_custom_call.1}
  #allocation0 [shape = 'u32[]', space=smem, size = 0x4, offset = 0x4, fixed_abs, tag = 'smem constant byte address 0x4 - core index']
  #allocation1 [shape = 'u32[144,128]{1,0:T(1,128)}', space=vmem, size = 0x12000, scoped, tag = 'internal scratch']
  #allocation2 [shape = 'f32[8,128]{1,0:T(8,128)}', space=vmem, size = 0x1000, scoped, tag = 'scratch operand']
  #allocation3 [shape = 'f32[1,128]{1,0:T(1,128)}', space=vmem, size = 0x200, scoped, tag = 'scratch operand']
  #allocation4 [shape = 'f32[1,128]{1,0:T(1,128)}', space=vmem, size = 0x200, scoped, tag = 'scratch operand']
  #allocation5 [shape = 'f32[8,128]{1,0:T(8,128)}', space=vmem, size = 0x1000, scoped, tag = 'scratch operand']
  #allocation6 [shape = 'f32[8,128]{1,0:T(8,128)}', space=vmem, size = 0x1000, scoped, tag = 'scratch operand']
  #allocation7 [shape = 'f32[8,8,128]{2,1,0:T(8,128)}', space=vmem, size = 0x8000, scoped, tag = 'scratch operand']
  %s0 = inlined_call_operand.vmem [shape: f32[8,1], index: 0, kind: input, shape index: {}]
  %s1 = inlined_call_operand.vmem [shape: f32[8,1], index: 1, kind: input, shape index: {}]
  %s2 = inlined_call_operand.vmem [shape: f32[8,8], index: 2, kind: input, shape index: {}]
  %s3 = inlined_call_operand.vmem [shape: f32[8,8], index: 3, kind: input, shape index: {}]
  %s4 = inlined_call_operand.hbm [shape: f32[8,8,128], index: 4, kind: input, shape index: {}]
  %s5 = inlined_call_operand.vmem [shape: s32[8,128], index: 5, kind: input, shape index: {}]
  %s6 = inlined_call_operand.vmem [shape: f32[8,128], index: 6, kind: input, shape index: {}]
  %s7 = inlined_call_operand.hbm [shape: f32[1,128], index: 7, kind: output, shape index: {}]
  %s8 = sld [smem:[#allocation0]]
  $region50: #{tpu_custom_call.1} parent=0
    _
  %s10 = ssub.s32 1, %s8
  %s11 = scalar_select 0, %s10, %s8
  $region1: #{tpu_custom_call.1} parent=0
    #allocation8 [shape = 'u8[32768]{0}', space=vmem, size = 0x8000, scoped, tag = 'input window, operand 4, single buffered']
    #allocation9 [shape = 's32[1]{0}', space=sflag, size = 0x4, scoped, tag = 'scoped memory for tpu_custom_call.1']
    #allocation10 [shape = 's32[1]{0}', space=sflag, size = 0x4, scoped, tag = 'scoped memory for tpu_custom_call.1']
    #allocation11 [shape = 'u8[512]{0}', space=vmem, size = 0x400, scoped, tag = 'output window, operand 0, single buffered']
    %12 = vsyncpa [#allocation9], 0
    %13 = vsyncpa [#allocation10], 0
    // Predicated region
    $region2: #{tpu_custom_call.1} parent=1 // pred_check
      _
    $region3: #{tpu_custom_call.1} parent=1 // pred_check_branch
      %15 = sbr.rel (0) target = $region5
    $region4: #{tpu_custom_call.1} parent=1 // pred_region
      _
    $region5: #{tpu_custom_call.1} parent=1 // pred_fallthru
      _
    // Predicated region
    $region6: #{tpu_custom_call.1} parent=1 // pred_check
      _
    $region7: #{tpu_custom_call.1} parent=1 // pred_check_branch
      %17 = sbr.rel (0) target = $region9
    $region8: #{tpu_custom_call.1} parent=1 // pred_region
      _
    $region9: #{tpu_custom_call.1} parent=1 // pred_fallthru
      _
    // Predicated region
    $region10: #{tpu_custom_call.1} parent=1 // pred_check
      _
    $region11: #{tpu_custom_call.1} parent=1 // pred_check_branch
      %19 = sbr.rel (0) target = $region13
    $region12: #{tpu_custom_call.1} parent=1 // pred_region
      _
    $region13: #{tpu_custom_call.1} parent=1 // pred_fallthru
      _
    // Predicated region
    $region14: #{tpu_custom_call.1} parent=1 // pred_check
      _
    $region15: #{tpu_custom_call.1} parent=1 // pred_check_branch
      %21 = sbr.rel (0) target = $region17
    $region16: #{tpu_custom_call.1} parent=1 // pred_region
      _
    $region17: #{tpu_custom_call.1} parent=1 // pred_fallthru
      _
    // Predicated region
    $region18: #{tpu_custom_call.1} parent=1 // pred_check
      _
    $region19: #{tpu_custom_call.1} parent=1 // pred_check_branch
      %23 = sbr.rel (0) target = $region21
    $region20: #{tpu_custom_call.1} parent=1 // pred_region
      %s25 = ssub.s32 1024, 1024
      %26 = vsyncadd [#allocation9], %s25
      %s27 = sshll.u32 [#allocation8], 4
      %s28 = int_to_ptr.vmem [resolvable:$true] %s27
      %33 = dma.hbm_to_vmem [thread:$0]  %s4, 1024, %s28, [#allocation9], 128, 128, 8
    $region21: #{tpu_custom_call.1} parent=1 // pred_fallthru
      _
    // Predicated region
    $region22: #{tpu_custom_call.1} parent=1 // pred_check
      _
    $region23: #{tpu_custom_call.1} parent=1 // pred_check_branch
      %35 = sbr.rel (0) target = $region25
    $region24: #{tpu_custom_call.1} parent=1 // pred_region
      _
    $region25: #{tpu_custom_call.1} parent=1 // pred_fallthru
      _
    // Predicated region
    $region26: #{tpu_custom_call.1} parent=1 // pred_check
      _
    $region27: #{tpu_custom_call.1} parent=1 // pred_check_branch
      %37 = sbr.rel (0) target = $region29
    $region28: #{tpu_custom_call.1} parent=1 // pred_region
      _
    $region29: #{tpu_custom_call.1} parent=1 // pred_fallthru
      _
    // Predicated region
    $region30: #{tpu_custom_call.1} parent=1 // pred_check
      _
    $region31: #{tpu_custom_call.1} parent=1 // pred_check_branch
      %39 = sbr.rel (0) target = $region33
    $region32: #{tpu_custom_call.1} parent=1 // pred_region
      %40 = dma.done [#allocation9], 1024
    $region33: #{tpu_custom_call.1} parent=1 // pred_fallthru
      _
    %v41 = vld [vmem:[%s0] sm:$0xff]
    %v42 = vld [vmem:[%s1] sm:$0xff]
    %v43 = vld [vmem:[%s2] sm:$0xff]
    %v44 = vld [vmem:[%s3] sm:$0xff]
    %v45 = vlaneseq
    %v46 = vshrl.u32 %v45, 7
    %p47 = scmp.eq.s32.totalorder 0, 0
    // Predicated region
    $region34: #{tpu_custom_call.1} parent=1 // pred_check
      %p48 = pneg %p47
    $region35: #{tpu_custom_call.1} parent=1 // pred_check_branch
      %50 = sbr.rel (%p48) target = $region37
    $region36: #{tpu_custom_call.1} parent=1 // pred_region
      %v51 = vld [vmem:[#allocation8] sm:$0xff]
      %53 = vset.pattern.permute.xlu0 0
      %54 = vperm.xlu0 %53, %v41
      %v55 = vpop.permute.xlu0 %54
      %v57 = vadd.f32 %v55, %v51
      %v58 = vld [vmem:[%s5] sm:$0x1]
      %v59 = vlaneseq
      %v60 = vshrl.u32 %v59, 7
      %v61 = vsub.s32 0, %v60
      %v62 = vrot.slane %v58, %v61
      %vm63 = vcmp.eq.s32.totalorder %v46, %v62
      %v64 = vsel %vm63, 1, 0
      %v65 = vcvt.s32.f32 %v64
      %v66 = vrot.slane %v57, 4
      %v67 = vmax.f32 %v57, %v66
      %v68 = vrot.slane %v67, 2
      %v69 = vmax.f32 %v67, %v68
      %v70 = vrot.slane %v69, 1
      %v71 = vmax.f32 %v69, %v70
      %v72 = vsub.f32 %v57, %v71
      %v73 = vmul.f32 %v72, 1.442695
      %v74 = vpow.pop %v73
      %75 = vst [vmem:[#allocation2] sm:$0xff] %v74
      %76 = vst [vmem:[#allocation3] sm:$0x1] %v71
      %v77 = vmul.f32 %v57, %v65
      %v78 = vrot.slane %v77, 4
      %v79 = vadd.f32 %v77, %v78
      %v80 = vrot.slane %v79, 2
      %v81 = vadd.f32 %v79, %v80
      %v82 = vrot.slane %v81, 1
      %v83 = vadd.f32 %v81, %v82
      %84 = vst [vmem:[#allocation4] sm:$0x1] %v83
      %85 = vst [vmem:[#allocation5] sm:$0xff] %v65
      %86 = vst [vmem:[#allocation6] sm:$0xff] %v65
    $region37: #{tpu_custom_call.1} parent=1 // pred_fallthru
      _
    %v87 = vld [vmem:[#allocation8] sm:$0xff]
    %v88 = vld [vmem:[#allocation8 + $0x8] sm:$0xff]
    %v89 = vld [vmem:[#allocation8 + $0x10] sm:$0xff]
    %v90 = vld [vmem:[#allocation8 + $0x18] sm:$0xff]
    %v91 = vld [vmem:[#allocation8 + $0x20] sm:$0xff]
    %v92 = vld [vmem:[#allocation8 + $0x28] sm:$0xff]
    %v93 = vld [vmem:[#allocation8 + $0x30] sm:$0xff]
    %v94 = vld [vmem:[#allocation8 + $0x38] sm:$0xff]
    %v95 = vrot.slane %v87, 4
    %v96 = vmax.f32 %v87, %v95
    %v97 = vrot.slane %v96, 2
    %v98 = vmax.f32 %v96, %v97
    %v99 = vrot.slane %v98, 1
    %v100 = vmax.f32 %v98, %v99
    %v101 = vrot.slane %v88, 4
    %v102 = vmax.f32 %v88, %v101
    %v103 = vrot.slane %v102, 2
    %v104 = vmax.f32 %v102, %v103
    %v105 = vrot.slane %v104, 1
    %v106 = vmax.f32 %v104, %v105
    %v107 = vrot.slane %v89, 4
    %v108 = vmax.f32 %v89, %v107
    %v109 = vrot.slane %v108, 2
    %v110 = vmax.f32 %v108, %v109
    %v111 = vrot.slane %v110, 1
    %v112 = vmax.f32 %v110, %v111
    %v113 = vrot.slane %v90, 4
    %v114 = vmax.f32 %v90, %v113
    %v115 = vrot.slane %v114, 2
    %v116 = vmax.f32 %v114, %v115
    %v117 = vrot.slane %v116, 1
    %v118 = vmax.f32 %v116, %v117
    %v119 = vrot.slane %v91, 4
    %v120 = vmax.f32 %v91, %v119
    %v121 = vrot.slane %v120, 2
    %v122 = vmax.f32 %v120, %v121
    %v123 = vrot.slane %v122, 1
    %v124 = vmax.f32 %v122, %v123
    %v125 = vrot.slane %v92, 4
    %v126 = vmax.f32 %v92, %v125
    %v127 = vrot.slane %v126, 2
    %v128 = vmax.f32 %v126, %v127
    %v129 = vrot.slane %v128, 1
    %v130 = vmax.f32 %v128, %v129
    %v131 = vrot.slane %v93, 4
    %v132 = vmax.f32 %v93, %v131
    %v133 = vrot.slane %v132, 2
    %v134 = vmax.f32 %v132, %v133
    %v135 = vrot.slane %v134, 1
    %v136 = vmax.f32 %v134, %v135
    %v137 = vrot.slane %v94, 4
    %v138 = vmax.f32 %v94, %v137
    %v139 = vrot.slane %v138, 2
    %v140 = vmax.f32 %v138, %v139
    %v141 = vrot.slane %v140, 1
    %v142 = vmax.f32 %v140, %v141
    %v143 = vsub.f32 %v87, %v100
    %v144 = vsub.f32 %v88, %v106
    %v145 = vsub.f32 %v89, %v112
    %v146 = vsub.f32 %v90, %v118
    %v147 = vsub.f32 %v91, %v124
    %v148 = vsub.f32 %v92, %v130
    %v149 = vsub.f32 %v93, %v136
    %v150 = vsub.f32 %v94, %v142
    %v151 = vmul.f32 %v143, 1.442695
    %v152 = vpow.pop %v151
    %v153 = vmul.f32 %v144, 1.442695
    %v154 = vpow.pop %v153
    %v155 = vmul.f32 %v145, 1.442695
    %v156 = vpow.pop %v155
    %v157 = vmul.f32 %v146, 1.442695
    %v158 = vpow.pop %v157
    %v159 = vmul.f32 %v147, 1.442695
    %v160 = vpow.pop %v159
    %v161 = vmul.f32 %v148, 1.442695
    %v162 = vpow.pop %v161
    %v163 = vmul.f32 %v149, 1.442695
    %v164 = vpow.pop %v163
    %v165 = vmul.f32 %v150, 1.442695
    %v166 = vpow.pop %v165
    %167 = vst [vmem:[#allocation7] sm:$0xff] %v152
    %168 = vst [vmem:[#allocation7 + $0x8] sm:$0xff] %v154
    %169 = vst [vmem:[#allocation7 + $0x10] sm:$0xff] %v156
    %170 = vst [vmem:[#allocation7 + $0x18] sm:$0xff] %v158
    %171 = vst [vmem:[#allocation7 + $0x20] sm:$0xff] %v160
    %172 = vst [vmem:[#allocation7 + $0x28] sm:$0xff] %v162
    %173 = vst [vmem:[#allocation7 + $0x30] sm:$0xff] %v164
    %174 = vst [vmem:[#allocation7 + $0x38] sm:$0xff] %v166
    %v175 = vld [vmem:[%s6] sm:$0xff]
    %vm176 = vcmp.eq.s32.totalorder %v46, 0
    %s177 = scalar_select %p47, 1, 0
    %v178 = vstv %s177
    %vm179 = vcmp.eq.s32.totalorder %v178, 1
    %vm180 = vmand %vm176, %vm179
    %v181 = vsel %vm180, 0.0, %v175
    %v182 = vld [vmem:[#allocation3] sm:$0x1]
    %v184 = vrot.slane %v181, 1
    %v185 = vrot.slane %v181, 2
    %v186 = vrot.slane %v181, 3
    %v187 = vrot.slane %v181, 4
    %v188 = vrot.slane %v181, 5
    %v189 = vrot.slane %v181, 6
    %v190 = vrot.slane %v181, 7
    %v199 = vmul.f32 %v100, %v181
    %v200 = vmul.f32 %v106, %v184
    %v201 = vmul.f32 %v112, %v185
    %v202 = vmul.f32 %v118, %v186
    %v203 = vmul.f32 %v124, %v187
    %v204 = vmul.f32 %v130, %v188
    %v205 = vmul.f32 %v136, %v189
    %v206 = vmul.f32 %v142, %v190
    %v215 = vrot.slane %v200, 7
    %vm216 = vcmask 1041409
    %v217 = vsel %vm216, %v215, %v199
    %v218 = vrot.slane %v201, 6
    %vm219 = vcmask 1042434
    %v220 = vsel %vm219, %v218, %v217
    %v221 = vrot.slane %v202, 5
    %vm222 = vcmask 1043459
    %v223 = vsel %vm222, %v221, %v220
    %v224 = vrot.slane %v203, 4
    %vm225 = vcmask 1044484
    %v226 = vsel %vm225, %v224, %v223
    %v227 = vrot.slane %v204, 3
    %vm228 = vcmask 1045509
    %v229 = vsel %vm228, %v227, %v226
    %v230 = vrot.slane %v205, 2
    %vm231 = vcmask 1046534
    %v232 = vsel %vm231, %v230, %v229
    %v233 = vrot.slane %v206, 1
    %vm234 = vcmask 1047559
    %v235 = vsel %vm234, %v233, %v232
    %v237 = vrot.slane %v235, 4
    %v238 = vadd.f32 %v235, %v237
    %v239 = vrot.slane %v238, 2
    %v240 = vadd.f32 %v238, %v239
    %v241 = vrot.slane %v240, 1
    %v242 = vadd.f32 %v240, %v241
    %v243 = vadd.f32 %v182, %v242
    %244 = vst [vmem:[#allocation3] sm:$0x1] %v243
    %v245 = vld [vmem:[#allocation2] sm:$0xff]
    %v246 = vld [vmem:[#allocation3] sm:$0x1]
    %v247 = vld [vmem:[#allocation4] sm:$0x1]
    %v248 = vld [vmem:[#allocation5] sm:$0xff]
    %v249 = vld [vmem:[#allocation6] sm:$0xff]
    %v250 = vld [vmem:[%s6] sm:$0x1]
    %v251 = vsel %vm179, 0.0, %v250
    %vm252 = vcmask 64512
    %v254 = vsel %vm252, %v44, 0
    %256 = vmatprep.subr.mxu0 0.0
    %257 = vmatpush1.msra.mxu0 %v245
    %258 = vmatprep.subr.mxu0 0.0
    %259 = vmatpush1.msra.mxu0 0.0
    %260 = vmatprep.subr.mxu0 0.0
    %261 = vmatpush1.msra.mxu0 0.0
    %262 = vmatprep.subr.mxu0 0.0
    %263 = vmatpush1.msra.mxu0 0.0
    %264 = vmatprep.subr.mxu0 0.0
    %265 = vmatpush1.msra.mxu0 0.0
    %266 = vmatprep.subr.mxu0 0.0
    %267 = vmatpush1.msra.mxu0 0.0
    %268 = vmatprep.subr.mxu0 0.0
    %269 = vmatpush1.msra.mxu0 0.0
    %270 = vmatprep.subr.mxu0 0.0
    %271 = vmatpush1.msra.mxu0 0.0
    %272 = vmatprep.subr.mxu0 0.0
    %273 = vmatpush1.msra.mxu0 0.0
    %274 = vmatprep.subr.mxu0 0.0
    %275 = vmatpush1.msra.mxu0 0.0
    %276 = vmatprep.subr.mxu0 0.0
    %277 = vmatpush1.msra.mxu0 0.0
    %278 = vmatprep.subr.mxu0 0.0
    %279 = vmatpush1.msra.mxu0 0.0
    %280 = vmatprep.subr.mxu0 0.0
    %281 = vmatpush1.msra.mxu0 0.0
    %282 = vmatprep.subr.mxu0 0.0
    %283 = vmatpush1.msra.mxu0 0.0
    %284 = vmatprep.subr.mxu0 0.0
    %285 = vmatpush1.msra.mxu0 0.0
    %286 = vmatprep.subr.mxu0 0.0
    %287 = vmatpush1.msra.mxu0 0.0
    %288 = vmatprep.subr.mxu0 0.0
    %289 = vmatpush1.msra.mxu0 0.0
    %290 = vmatprep.subr.mxu0 0.0
    %291 = vmatpush1.msra.mxu0 0.0
    %292 = vmatprep.subr.mxu0 0.0
    %293 = vmatpush1.msra.mxu0 0.0
    %294 = vmatprep.subr.mxu0 0.0
    %295 = vmatpush1.msra.mxu0 0.0
    %296 = vmatprep.subr.mxu0 0.0
    %297 = vmatpush1.msra.mxu0 0.0
    %298 = vmatprep.subr.mxu0 0.0
    %299 = vmatpush1.msra.mxu0 0.0
    %300 = vmatprep.subr.mxu0 0.0
    %301 = vmatpush1.msra.mxu0 0.0
    %302 = vmatprep.subr.mxu0 0.0
    %303 = vmatpush1.msra.mxu0 0.0
    %304 = vmatprep.subr.mxu0 0.0
    %305 = vmatpush1.msra.mxu0 0.0
    %306 = vmatprep.subr.mxu0 0.0
    %307 = vmatpush1.msra.mxu0 0.0
    %308 = vmatprep.subr.mxu0 0.0
    %309 = vmatpush1.msra.mxu0 0.0
    %310 = vmatprep.subr.mxu0 0.0
    %311 = vmatpush1.msra.mxu0 0.0
    %312 = vmatprep.subr.mxu0 0.0
    %313 = vmatpush1.msra.mxu0 0.0
    %314 = vmatprep.subr.mxu0 0.0
    %315 = vmatpush1.msra.mxu0 0.0
    %316 = vmatprep.subr.mxu0 0.0
    %317 = vmatpush1.msra.mxu0 0.0
    %318 = vmatprep.subr.mxu0 0.0
    %319 = vmatpush1.msra.mxu0 0.0
    %320 = vmatprep.mubr.f32.mxu0 0.0
    %321 = vmatmul.mubr.f32.gmra.mrb[0].mxu0 %v254
    %v322 = vpop.f32.mrb[0].mxu0
    %v323 = vadd.f32 0.0, %v322
    %v324 = vpop.f32.mrb[0].mxu0
    %325 = vdwg.mxu0
    %v326 = vld [vmem:[#allocation7] sm:$0xff]
    %v327 = vmul.f32 %v323, %v326
    %v328 = vrot.slane %v327, 4
    %v329 = vmax.f32 %v327, %v328
    %v330 = vrot.slane %v329, 2
    %v331 = vmax.f32 %v329, %v330
    %v332 = vrot.slane %v331, 1
    %v333 = vmax.f32 %v331, %v332
    %v334 = vrcp.pop %v333
    %v335 = vlog2.pop %v334
    %v336 = vmul.f32 %v335, 0.6931472
    %v337 = vmul.f32 %v336, %v251
    %v338 = vsub.f32 %v246, %v337
    %vm339 = vcmp.gt.f32.partialorder %v251, 0.0
    %v340 = vmul.f32 %v327, %v334
    %v341 = vsel %vm339, 1, 0
    %v342 = vlaneseq
    %v343 = vshrl.u32 %v342, 7
    %v344 = vsub.s32 0, %v343
    %v345 = vrot.slane %v341, %v344
    %vm346 = vcmp.eq.s32.totalorder %v345, 1
    %v347 = vsel %vm346, %v340, %v245
    %v348 = vld [vmem:[%s5] sm:$0x1]
    %v349 = vlaneseq
    %v350 = vshrl.u32 %v349, 7
    %v351 = vsub.s32 0, %v350
    %v352 = vrot.slane %v348, %v351
    %vm353 = vcmp.eq.s32.totalorder %v46, %v352
    %v354 = vsel %vm353, 1, 0
    %v355 = vcvt.s32.f32 %v354
    %v356 = vld [vmem:[#allocation8] sm:$0xff]
    %v358 = vsel %vm252, %v43, 0
    %360 = vmatprep.subr.mxu0 0.0
    %361 = vmatpush1.msra.mxu0 %v248
    %362 = vmatprep.subr.mxu0 0.0
    %363 = vmatpush1.msra.mxu0 0.0
    %364 = vmatprep.subr.mxu0 0.0
    %365 = vmatpush1.msra.mxu0 0.0
    %366 = vmatprep.subr.mxu0 0.0
    %367 = vmatpush1.msra.mxu0 0.0
    %368 = vmatprep.subr.mxu0 0.0
    %369 = vmatpush1.msra.mxu0 0.0
    %370 = vmatprep.subr.mxu0 0.0
    %371 = vmatpush1.msra.mxu0 0.0
    %372 = vmatprep.subr.mxu0 0.0
    %373 = vmatpush1.msra.mxu0 0.0
    %374 = vmatprep.subr.mxu0 0.0
    %375 = vmatpush1.msra.mxu0 0.0
    %376 = vmatprep.subr.mxu0 0.0
    %377 = vmatpush1.msra.mxu0 0.0
    %378 = vmatprep.subr.mxu0 0.0
    %379 = vmatpush1.msra.mxu0 0.0
    %380 = vmatprep.subr.mxu0 0.0
    %381 = vmatpush1.msra.mxu0 0.0
    %382 = vmatprep.subr.mxu0 0.0
    %383 = vmatpush1.msra.mxu0 0.0
    %384 = vmatprep.subr.mxu0 0.0
    %385 = vmatpush1.msra.mxu0 0.0
    %386 = vmatprep.subr.mxu0 0.0
    %387 = vmatpush1.msra.mxu0 0.0
    %388 = vmatprep.subr.mxu0 0.0
    %389 = vmatpush1.msra.mxu0 0.0
    %390 = vmatprep.subr.mxu0 0.0
    %391 = vmatpush1.msra.mxu0 0.0
    %392 = vmatprep.subr.mxu0 0.0
    %393 = vmatpush1.msra.mxu0 0.0
    %394 = vmatprep.subr.mxu0 0.0
    %395 = vmatpush1.msra.mxu0 0.0
    %396 = vmatprep.subr.mxu0 0.0
    %397 = vmatpush1.msra.mxu0 0.0
    %398 = vmatprep.subr.mxu0 0.0
    %399 = vmatpush1.msra.mxu0 0.0
    %400 = vmatprep.subr.mxu0 0.0
    %401 = vmatpush1.msra.mxu0 0.0
    %402 = vmatprep.subr.mxu0 0.0
    %403 = vmatpush1.msra.mxu0 0.0
    %404 = vmatprep.subr.mxu0 0.0
    %405 = vmatpush1.msra.mxu0 0.0
    %406 = vmatprep.subr.mxu0 0.0
    %407 = vmatpush1.msra.mxu0 0.0
    %408 = vmatprep.subr.mxu0 0.0
    %409 = vmatpush1.msra.mxu0 0.0
    %410 = vmatprep.subr.mxu0 0.0
    %411 = vmatpush1.msra.mxu0 0.0
    %412 = vmatprep.subr.mxu0 0.0
    %413 = vmatpush1.msra.mxu0 0.0
    %414 = vmatprep.subr.mxu0 0.0
    %415 = vmatpush1.msra.mxu0 0.0
    %416 = vmatprep.subr.mxu0 0.0
    %417 = vmatpush1.msra.mxu0 0.0
    %418 = vmatprep.subr.mxu0 0.0
    %419 = vmatpush1.msra.mxu0 0.0
    %420 = vmatprep.subr.mxu0 0.0
    %421 = vmatpush1.msra.mxu0 0.0
    %422 = vmatprep.subr.mxu0 0.0
    %423 = vmatpush1.msra.mxu0 0.0
    %424 = vmatprep.mubr.f32.mxu0 0.0
    %425 = vmatmul.mubr.f32.gmra.mrb[0].mxu0 %v358
    %v426 = vpop.f32.mrb[0].mxu0
    %v427 = vadd.f32 %v356, %v426
    %v428 = vpop.f32.mrb[0].mxu0
    %429 = vdwg.mxu0
    %v430 = vmul.f32 %v427, %v355
    %v431 = vrot.slane %v430, 4
    %v432 = vadd.f32 %v430, %v431
    %v433 = vrot.slane %v432, 2
    %v434 = vadd.f32 %v432, %v433
    %v435 = vrot.slane %v434, 1
    %v436 = vadd.f32 %v434, %v435
    %v437 = vmul.f32 %v436, %v251
    %v438 = vadd.f32 %v247, %v437
    %v439 = vsel %vm346, %v355, %v249
    %v440 = vld [vmem:[%s6 + $0x1] sm:$0x1]
    %441 = vmatprep.subr.mxu0 0.0
    %442 = vmatpush1.msra.mxu0 %v347
    %443 = vmatprep.subr.mxu0 0.0
    %444 = vmatpush1.msra.mxu0 0.0
    %445 = vmatprep.subr.mxu0 0.0
    %446 = vmatpush1.msra.mxu0 0.0
    %447 = vmatprep.subr.mxu0 0.0
    %448 = vmatpush1.msra.mxu0 0.0
    %449 = vmatprep.subr.mxu0 0.0
    %450 = vmatpush1.msra.mxu0 0.0
    %451 = vmatprep.subr.mxu0 0.0
    %452 = vmatpush1.msra.mxu0 0.0
    %453 = vmatprep.subr.mxu0 0.0
    %454 = vmatpush1.msra.mxu0 0.0
    %455 = vmatprep.subr.mxu0 0.0
    %456 = vmatpush1.msra.mxu0 0.0
    %457 = vmatprep.subr.mxu0 0.0
    %458 = vmatpush1.msra.mxu0 0.0
    %459 = vmatprep.subr.mxu0 0.0
    %460 = vmatpush1.msra.mxu0 0.0
    %461 = vmatprep.subr.mxu0 0.0
    %462 = vmatpush1.msra.mxu0 0.0
    %463 = vmatprep.subr.mxu0 0.0
    %464 = vmatpush1.msra.mxu0 0.0
    %465 = vmatprep.subr.mxu0 0.0
    %466 = vmatpush1.msra.mxu0 0.0
    %467 = vmatprep.subr.mxu0 0.0
    %468 = vmatpush1.msra.mxu0 0.0
    %469 = vmatprep.subr.mxu0 0.0
    %470 = vmatpush1.msra.mxu0 0.0
    %471 = vmatprep.subr.mxu0 0.0
    %472 = vmatpush1.msra.mxu0 0.0
    %473 = vmatprep.subr.mxu0 0.0
    %474 = vmatpush1.msra.mxu0 0.0
    %475 = vmatprep.subr.mxu0 0.0
    %476 = vmatpush1.msra.mxu0 0.0
    %477 = vmatprep.subr.mxu0 0.0
    %478 = vmatpush1.msra.mxu0 0.0
    %479 = vmatprep.subr.mxu0 0.0
    %480 = vmatpush1.msra.mxu0 0.0
    %481 = vmatprep.subr.mxu0 0.0
    %482 = vmatpush1.msra.mxu0 0.0
    %483 = vmatprep.subr.mxu0 0.0
    %484 = vmatpush1.msra.mxu0 0.0
    %485 = vmatprep.subr.mxu0 0.0
    %486 = vmatpush1.msra.mxu0 0.0
    %487 = vmatprep.subr.mxu0 0.0
    %488 = vmatpush1.msra.mxu0 0.0
    %489 = vmatprep.subr.mxu0 0.0
    %490 = vmatpush1.msra.mxu0 0.0
    %491 = vmatprep.subr.mxu0 0.0
    %492 = vmatpush1.msra.mxu0 0.0
    %493 = vmatprep.subr.mxu0 0.0
    %494 = vmatpush1.msra.mxu0 0.0
    %495 = vmatprep.subr.mxu0 0.0
    %496 = vmatpush1.msra.mxu0 0.0
    %497 = vmatprep.subr.mxu0 0.0
    %498 = vmatpush1.msra.mxu0 0.0
    %499 = vmatprep.subr.mxu0 0.0
    %500 = vmatpush1.msra.mxu0 0.0
    %501 = vmatprep.subr.mxu0 0.0
    %502 = vmatpush1.msra.mxu0 0.0
    %503 = vmatprep.subr.mxu0 0.0
    %504 = vmatpush1.msra.mxu0 0.0
    %505 = vmatprep.mubr.f32.mxu0 0.0
    %506 = vmatmul.mubr.f32.gmra.mrb[0].mxu0 %v254
    %v507 = vpop.f32.mrb[0].mxu0
    %v508 = vadd.f32 0.0, %v507
    %v509 = vpop.f32.mrb[0].mxu0
    %510 = vdwg.mxu0
    %s511 = scalar_lea.vmem [#allocation7], 8
    %v512 = vld [vmem:[%s511] sm:$0xff]
    %v513 = vmul.f32 %v508, %v512
    %v514 = vrot.slane %v513, 4
    %v515 = vmax.f32 %v513, %v514
    %v516 = vrot.slane %v515, 2
    %v517 = vmax.f32 %v515, %v516
    %v518 = vrot.slane %v517, 1
    %v519 = vmax.f32 %v517, %v518
    %v520 = vrcp.pop %v519
    %v521 = vlog2.pop %v520
    %v522 = vmul.f32 %v521, 0.6931472
    %v523 = vmul.f32 %v522, %v440
    %v524 = vsub.f32 %v338, %v523
    %vm525 = vcmp.gt.f32.partialorder %v440, 0.0
    %v526 = vmul.f32 %v513, %v520
    %v527 = vsel %vm525, 1, 0
    %v528 = vlaneseq
    %v529 = vshrl.u32 %v528, 7
    %v530 = vsub.s32 0, %v529
    %v531 = vrot.slane %v527, %v530
    %vm532 = vcmp.eq.s32.totalorder %v531, 1
    %v533 = vsel %vm532, %v526, %v347
    %v534 = vld [vmem:[%s5 + $0x1] sm:$0x1]
    %v535 = vlaneseq
    %v536 = vshrl.u32 %v535, 7
    %v537 = vsub.s32 0, %v536
    %v538 = vrot.slane %v534, %v537
    %vm539 = vcmp.eq.s32.totalorder %v46, %v538
    %v540 = vsel %vm539, 1, 0
    %v541 = vcvt.s32.f32 %v540
    %s542 = scalar_lea.vmem [#allocation8], 8
    %v543 = vld [vmem:[%s542] sm:$0xff]
    %544 = vmatprep.subr.mxu0 0.0
    %545 = vmatpush1.msra.mxu0 %v355
    %546 = vmatprep.subr.mxu0 0.0
    %547 = vmatpush1.msra.mxu0 0.0
    %548 = vmatprep.subr.mxu0 0.0
    %549 = vmatpush1.msra.mxu0 0.0
    %550 = vmatprep.subr.mxu0 0.0
    %551 = vmatpush1.msra.mxu0 0.0
    %552 = vmatprep.subr.mxu0 0.0
    %553 = vmatpush1.msra.mxu0 0.0
    %554 = vmatprep.subr.mxu0 0.0
    %555 = vmatpush1.msra.mxu0 0.0
    %556 = vmatprep.subr.mxu0 0.0
    %557 = vmatpush1.msra.mxu0 0.0
    %558 = vmatprep.subr.mxu0 0.0
    %559 = vmatpush1.msra.mxu0 0.0
    %560 = vmatprep.subr.mxu0 0.0
    %561 = vmatpush1.msra.mxu0 0.0
    %562 = vmatprep.subr.mxu0 0.0
    %563 = vmatpush1.msra.mxu0 0.0
    %564 = vmatprep.subr.mxu0 0.0
    %565 = vmatpush1.msra.mxu0 0.0
    %566 = vmatprep.subr.mxu0 0.0
    %567 = vmatpush1.msra.mxu0 0.0
    %568 = vmatprep.subr.mxu0 0.0
    %569 = vmatpush1.msra.mxu0 0.0
    %570 = vmatprep.subr.mxu0 0.0
    %571 = vmatpush1.msra.mxu0 0.0
    %572 = vmatprep.subr.mxu0 0.0
    %573 = vmatpush1.msra.mxu0 0.0
    %574 = vmatprep.subr.mxu0 0.0
    %575 = vmatpush1.msra.mxu0 0.0
    %576 = vmatprep.subr.mxu0 0.0
    %577 = vmatpush1.msra.mxu0 0.0
    %578 = vmatprep.subr.mxu0 0.0
    %579 = vmatpush1.msra.mxu0 0.0
    %580 = vmatprep.subr.mxu0 0.0
    %581 = vmatpush1.msra.mxu0 0.0
    %582 = vmatprep.subr.mxu0 0.0
    %583 = vmatpush1.msra.mxu0 0.0
    %584 = vmatprep.subr.mxu0 0.0
    %585 = vmatpush1.msra.mxu0 0.0
    %586 = vmatprep.subr.mxu0 0.0
    %587 = vmatpush1.msra.mxu0 0.0
    %588 = vmatprep.subr.mxu0 0.0
    %589 = vmatpush1.msra.mxu0 0.0
    %590 = vmatprep.subr.mxu0 0.0
    %591 = vmatpush1.msra.mxu0 0.0
    %592 = vmatprep.subr.mxu0 0.0
    %593 = vmatpush1.msra.mxu0 0.0
    %594 = vmatprep.subr.mxu0 0.0
    %595 = vmatpush1.msra.mxu0 0.0
    %596 = vmatprep.subr.mxu0 0.0
    %597 = vmatpush1.msra.mxu0 0.0
    %598 = vmatprep.subr.mxu0 0.0
    %599 = vmatpush1.msra.mxu0 0.0
    %600 = vmatprep.subr.mxu0 0.0
    %601 = vmatpush1.msra.mxu0 0.0
    %602 = vmatprep.subr.mxu0 0.0
    %603 = vmatpush1.msra.mxu0 0.0
    %604 = vmatprep.subr.mxu0 0.0
    %605 = vmatpush1.msra.mxu0 0.0
    %606 = vmatprep.subr.mxu0 0.0
    %607 = vmatpush1.msra.mxu0 0.0
    %608 = vmatprep.mubr.f32.mxu0 0.0
    %609 = vmatmul.mubr.f32.gmra.mrb[0].mxu0 %v358
    %v610 = vpop.f32.mrb[0].mxu0
    %v611 = vadd.f32 %v543, %v610
    %v612 = vpop.f32.mrb[0].mxu0
    %613 = vdwg.mxu0
    %v614 = vmul.f32 %v611, %v541
    %v615 = vrot.slane %v614, 4
    %v616 = vadd.f32 %v614, %v615
    %v617 = vrot.slane %v616, 2
    %v618 = vadd.f32 %v616, %v617
    %v619 = vrot.slane %v618, 1
    %v620 = vadd.f32 %v618, %v619
    %v621 = vmul.f32 %v620, %v440
    %v622 = vadd.f32 %v438, %v621
    %v623 = vsel %vm532, %v541, %v439
    %v624 = vld [vmem:[%s6 + $0x2] sm:$0x1]
    %625 = vmatprep.subr.mxu0 0.0
    %626 = vmatpush1.msra.mxu0 %v533
    %627 = vmatprep.subr.mxu0 0.0
    %628 = vmatpush1.msra.mxu0 0.0
    %629 = vmatprep.subr.mxu0 0.0
    %630 = vmatpush1.msra.mxu0 0.0
    %631 = vmatprep.subr.mxu0 0.0
    %632 = vmatpush1.msra.mxu0 0.0
    %633 = vmatprep.subr.mxu0 0.0
    %634 = vmatpush1.msra.mxu0 0.0
    %635 = vmatprep.subr.mxu0 0.0
    %636 = vmatpush1.msra.mxu0 0.0
    %637 = vmatprep.subr.mxu0 0.0
    %638 = vmatpush1.msra.mxu0 0.0
    %639 = vmatprep.subr.mxu0 0.0
    %640 = vmatpush1.msra.mxu0 0.0
    %641 = vmatprep.subr.mxu0 0.0
    %642 = vmatpush1.msra.mxu0 0.0
    %643 = vmatprep.subr.mxu0 0.0
    %644 = vmatpush1.msra.mxu0 0.0
    %645 = vmatprep.subr.mxu0 0.0
    %646 = vmatpush1.msra.mxu0 0.0
    %647 = vmatprep.subr.mxu0 0.0
    %648 = vmatpush1.msra.mxu0 0.0
    %649 = vmatprep.subr.mxu0 0.0
    %650 = vmatpush1.msra.mxu0 0.0
    %651 = vmatprep.subr.mxu0 0.0
    %652 = vmatpush1.msra.mxu0 0.0
    %653 = vmatprep.subr.mxu0 0.0
    %654 = vmatpush1.msra.mxu0 0.0
    %655 = vmatprep.subr.mxu0 0.0
    %656 = vmatpush1.msra.mxu0 0.0
    %657 = vmatprep.subr.mxu0 0.0
    %658 = vmatpush1.msra.mxu0 0.0
    %659 = vmatprep.subr.mxu0 0.0
    %660 = vmatpush1.msra.mxu0 0.0
    %661 = vmatprep.subr.mxu0 0.0
    %662 = vmatpush1.msra.mxu0 0.0
    %663 = vmatprep.subr.mxu0 0.0
    %664 = vmatpush1.msra.mxu0 0.0
    %665 = vmatprep.subr.mxu0 0.0
    %666 = vmatpush1.msra.mxu0 0.0
    %667 = vmatprep.subr.mxu0 0.0
    %668 = vmatpush1.msra.mxu0 0.0
    %669 = vmatprep.subr.mxu0 0.0
    %670 = vmatpush1.msra.mxu0 0.0
    %671 = vmatprep.subr.mxu0 0.0
    %672 = vmatpush1.msra.mxu0 0.0
    %673 = vmatprep.subr.mxu0 0.0
    %674 = vmatpush1.msra.mxu0 0.0
    %675 = vmatprep.subr.mxu0 0.0
    %676 = vmatpush1.msra.mxu0 0.0
    %677 = vmatprep.subr.mxu0 0.0
    %678 = vmatpush1.msra.mxu0 0.0
    %679 = vmatprep.subr.mxu0 0.0
    %680 = vmatpush1.msra.mxu0 0.0
    %681 = vmatprep.subr.mxu0 0.0
    %682 = vmatpush1.msra.mxu0 0.0
    %683 = vmatprep.subr.mxu0 0.0
    %684 = vmatpush1.msra.mxu0 0.0
    %685 = vmatprep.subr.mxu0 0.0
    %686 = vmatpush1.msra.mxu0 0.0
    %687 = vmatprep.subr.mxu0 0.0
    %688 = vmatpush1.msra.mxu0 0.0
    %689 = vmatprep.mubr.f32.mxu0 0.0
    %690 = vmatmul.mubr.f32.gmra.mrb[0].mxu0 %v254
    %v691 = vpop.f32.mrb[0].mxu0
    %v692 = vadd.f32 0.0, %v691
    %v693 = vpop.f32.mrb[0].mxu0
    %694 = vdwg.mxu0
    %s695 = scalar_lea.vmem [#allocation7], 16
    %v696 = vld [vmem:[%s695] sm:$0xff]
    %v697 = vmul.f32 %v692, %v696
    %v698 = vrot.slane %v697, 4
    %v699 = vmax.f32 %v697, %v698
    %v700 = vrot.slane %v699, 2
    %v701 = vmax.f32 %v699, %v700
    %v702 = vrot.slane %v701, 1
    %v703 = vmax.f32 %v701, %v702
    %v704 = vrcp.pop %v703
    %v705 = vlog2.pop %v704
    %v706 = vmul.f32 %v705, 0.6931472
    %v707 = vmul.f32 %v706, %v624
    %v708 = vsub.f32 %v524, %v707
    %vm709 = vcmp.gt.f32.partialorder %v624, 0.0
    %v710 = vmul.f32 %v697, %v704
    %v711 = vsel %vm709, 1, 0
    %v712 = vlaneseq
    %v713 = vshrl.u32 %v712, 7
    %v714 = vsub.s32 0, %v713
    %v715 = vrot.slane %v711, %v714
    %vm716 = vcmp.eq.s32.totalorder %v715, 1
    %v717 = vsel %vm716, %v710, %v533
    %v718 = vld [vmem:[%s5 + $0x2] sm:$0x1]
    %v719 = vlaneseq
    %v720 = vshrl.u32 %v719, 7
    %v721 = vsub.s32 0, %v720
    %v722 = vrot.slane %v718, %v721
    %vm723 = vcmp.eq.s32.totalorder %v46, %v722
    %v724 = vsel %vm723, 1, 0
    %v725 = vcvt.s32.f32 %v724
    %s726 = scalar_lea.vmem [#allocation8], 16
    %v727 = vld [vmem:[%s726] sm:$0xff]
    %728 = vmatprep.subr.mxu0 0.0
    %729 = vmatpush1.msra.mxu0 %v541
    %730 = vmatprep.subr.mxu0 0.0
    %731 = vmatpush1.msra.mxu0 0.0
    %732 = vmatprep.subr.mxu0 0.0
    %733 = vmatpush1.msra.mxu0 0.0
    %734 = vmatprep.subr.mxu0 0.0
    %735 = vmatpush1.msra.mxu0 0.0
    %736 = vmatprep.subr.mxu0 0.0
    %737 = vmatpush1.msra.mxu0 0.0
    %738 = vmatprep.subr.mxu0 0.0
    %739 = vmatpush1.msra.mxu0 0.0
    %740 = vmatprep.subr.mxu0 0.0
    %741 = vmatpush1.msra.mxu0 0.0
    %742 = vmatprep.subr.mxu0 0.0
    %743 = vmatpush1.msra.mxu0 0.0
    %744 = vmatprep.subr.mxu0 0.0
    %745 = vmatpush1.msra.mxu0 0.0
    %746 = vmatprep.subr.mxu0 0.0
    %747 = vmatpush1.msra.mxu0 0.0
    %748 = vmatprep.subr.mxu0 0.0
    %749 = vmatpush1.msra.mxu0 0.0
    %750 = vmatprep.subr.mxu0 0.0
    %751 = vmatpush1.msra.mxu0 0.0
    %752 = vmatprep.subr.mxu0 0.0
    %753 = vmatpush1.msra.mxu0 0.0
    %754 = vmatprep.subr.mxu0 0.0
    %755 = vmatpush1.msra.mxu0 0.0
    %756 = vmatprep.subr.mxu0 0.0
    %757 = vmatpush1.msra.mxu0 0.0
    %758 = vmatprep.subr.mxu0 0.0
    %759 = vmatpush1.msra.mxu0 0.0
    %760 = vmatprep.subr.mxu0 0.0
    %761 = vmatpush1.msra.mxu0 0.0
    %762 = vmatprep.subr.mxu0 0.0
    %763 = vmatpush1.msra.mxu0 0.0
    %764 = vmatprep.subr.mxu0 0.0
    %765 = vmatpush1.msra.mxu0 0.0
    %766 = vmatprep.subr.mxu0 0.0
    %767 = vmatpush1.msra.mxu0 0.0
    %768 = vmatprep.subr.mxu0 0.0
    %769 = vmatpush1.msra.mxu0 0.0
    %770 = vmatprep.subr.mxu0 0.0
    %771 = vmatpush1.msra.mxu0 0.0
    %772 = vmatprep.subr.mxu0 0.0
    %773 = vmatpush1.msra.mxu0 0.0
    %774 = vmatprep.subr.mxu0 0.0
    %775 = vmatpush1.msra.mxu0 0.0
    %776 = vmatprep.subr.mxu0 0.0
    %777 = vmatpush1.msra.mxu0 0.0
    %778 = vmatprep.subr.mxu0 0.0
    %779 = vmatpush1.msra.mxu0 0.0
    %780 = vmatprep.subr.mxu0 0.0
    %781 = vmatpush1.msra.mxu0 0.0
    %782 = vmatprep.subr.mxu0 0.0
    %783 = vmatpush1.msra.mxu0 0.0
    %784 = vmatprep.subr.mxu0 0.0
    %785 = vmatpush1.msra.mxu0 0.0
    %786 = vmatprep.subr.mxu0 0.0
    %787 = vmatpush1.msra.mxu0 0.0
    %788 = vmatprep.subr.mxu0 0.0
    %789 = vmatpush1.msra.mxu0 0.0
    %790 = vmatprep.subr.mxu0 0.0
    %791 = vmatpush1.msra.mxu0 0.0
    %792 = vmatprep.mubr.f32.mxu0 0.0
    %793 = vmatmul.mubr.f32.gmra.mrb[0].mxu0 %v358
    %v794 = vpop.f32.mrb[0].mxu0
    %v795 = vadd.f32 %v727, %v794
    %v796 = vpop.f32.mrb[0].mxu0
    %797 = vdwg.mxu0
    %v798 = vmul.f32 %v795, %v725
    %v799 = vrot.slane %v798, 4
    %v800 = vadd.f32 %v798, %v799
    %v801 = vrot.slane %v800, 2
    %v802 = vadd.f32 %v800, %v801
    %v803 = vrot.slane %v802, 1
    %v804 = vadd.f32 %v802, %v803
    %v805 = vmul.f32 %v804, %v624
    %v806 = vadd.f32 %v622, %v805
    %v807 = vsel %vm716, %v725, %v623
    %v808 = vld [vmem:[%s6 + $0x3] sm:$0x1]
    %809 = vmatprep.subr.mxu0 0.0
    %810 = vmatpush1.msra.mxu0 %v717
    %811 = vmatprep.subr.mxu0 0.0
    %812 = vmatpush1.msra.mxu0 0.0
    %813 = vmatprep.subr.mxu0 0.0
    %814 = vmatpush1.msra.mxu0 0.0
    %815 = vmatprep.subr.mxu0 0.0
    %816 = vmatpush1.msra.mxu0 0.0
    %817 = vmatprep.subr.mxu0 0.0
    %818 = vmatpush1.msra.mxu0 0.0
    %819 = vmatprep.subr.mxu0 0.0
    %820 = vmatpush1.msra.mxu0 0.0
    %821 = vmatprep.subr.mxu0 0.0
    %822 = vmatpush1.msra.mxu0 0.0
    %823 = vmatprep.subr.mxu0 0.0
    %824 = vmatpush1.msra.mxu0 0.0
    %825 = vmatprep.subr.mxu0 0.0
    %826 = vmatpush1.msra.mxu0 0.0
    %827 = vmatprep.subr.mxu0 0.0
    %828 = vmatpush1.msra.mxu0 0.0
    %829 = vmatprep.subr.mxu0 0.0
    %830 = vmatpush1.msra.mxu0 0.0
    %831 = vmatprep.subr.mxu0 0.0
    %832 = vmatpush1.msra.mxu0 0.0
    %833 = vmatprep.subr.mxu0 0.0
    %834 = vmatpush1.msra.mxu0 0.0
    %835 = vmatprep.subr.mxu0 0.0
    %836 = vmatpush1.msra.mxu0 0.0
    %837 = vmatprep.subr.mxu0 0.0
    %838 = vmatpush1.msra.mxu0 0.0
    %839 = vmatprep.subr.mxu0 0.0
    %840 = vmatpush1.msra.mxu0 0.0
    %841 = vmatprep.subr.mxu0 0.0
    %842 = vmatpush1.msra.mxu0 0.0
    %843 = vmatprep.subr.mxu0 0.0
    %844 = vmatpush1.msra.mxu0 0.0
    %845 = vmatprep.subr.mxu0 0.0
    %846 = vmatpush1.msra.mxu0 0.0
    %847 = vmatprep.subr.mxu0 0.0
    %848 = vmatpush1.msra.mxu0 0.0
    %849 = vmatprep.subr.mxu0 0.0
    %850 = vmatpush1.msra.mxu0 0.0
    %851 = vmatprep.subr.mxu0 0.0
    %852 = vmatpush1.msra.mxu0 0.0
    %853 = vmatprep.subr.mxu0 0.0
    %854 = vmatpush1.msra.mxu0 0.0
    %855 = vmatprep.subr.mxu0 0.0
    %856 = vmatpush1.msra.mxu0 0.0
    %857 = vmatprep.subr.mxu0 0.0
    %858 = vmatpush1.msra.mxu0 0.0
    %859 = vmatprep.subr.mxu0 0.0
    %860 = vmatpush1.msra.mxu0 0.0
    %861 = vmatprep.subr.mxu0 0.0
    %862 = vmatpush1.msra.mxu0 0.0
    %863 = vmatprep.subr.mxu0 0.0
    %864 = vmatpush1.msra.mxu0 0.0
    %865 = vmatprep.subr.mxu0 0.0
    %866 = vmatpush1.msra.mxu0 0.0
    %867 = vmatprep.subr.mxu0 0.0
    %868 = vmatpush1.msra.mxu0 0.0
    %869 = vmatprep.subr.mxu0 0.0
    %870 = vmatpush1.msra.mxu0 0.0
    %871 = vmatprep.subr.mxu0 0.0
    %872 = vmatpush1.msra.mxu0 0.0
    %873 = vmatprep.mubr.f32.mxu0 0.0
    %874 = vmatmul.mubr.f32.gmra.mrb[0].mxu0 %v254
    %v875 = vpop.f32.mrb[0].mxu0
    %v876 = vadd.f32 0.0, %v875
    %v877 = vpop.f32.mrb[0].mxu0
    %878 = vdwg.mxu0
    %s879 = scalar_lea.vmem [#allocation7], 24
    %v880 = vld [vmem:[%s879] sm:$0xff]
    %v881 = vmul.f32 %v876, %v880
    %v882 = vrot.slane %v881, 4
    %v883 = vmax.f32 %v881, %v882
    %v884 = vrot.slane %v883, 2
    %v885 = vmax.f32 %v883, %v884
    %v886 = vrot.slane %v885, 1
    %v887 = vmax.f32 %v885, %v886
    %v888 = vrcp.pop %v887
    %v889 = vlog2.pop %v888
    %v890 = vmul.f32 %v889, 0.6931472
    %v891 = vmul.f32 %v890, %v808
    %v892 = vsub.f32 %v708, %v891
    %vm893 = vcmp.gt.f32.partialorder %v808, 0.0
    %v894 = vmul.f32 %v881, %v888
    %v895 = vsel %vm893, 1, 0
    %v896 = vlaneseq
    %v897 = vshrl.u32 %v896, 7
    %v898 = vsub.s32 0, %v897
    %v899 = vrot.slane %v895, %v898
    %vm900 = vcmp.eq.s32.totalorder %v899, 1
    %v901 = vsel %vm900, %v894, %v717
    %v902 = vld [vmem:[%s5 + $0x3] sm:$0x1]
    %v903 = vlaneseq
    %v904 = vshrl.u32 %v903, 7
    %v905 = vsub.s32 0, %v904
    %v906 = vrot.slane %v902, %v905
    %vm907 = vcmp.eq.s32.totalorder %v46, %v906
    %v908 = vsel %vm907, 1, 0
    %v909 = vcvt.s32.f32 %v908
    %s910 = scalar_lea.vmem [#allocation8], 24
    %v911 = vld [vmem:[%s910] sm:$0xff]
    %912 = vmatprep.subr.mxu0 0.0
    %913 = vmatpush1.msra.mxu0 %v725
    %914 = vmatprep.subr.mxu0 0.0
    %915 = vmatpush1.msra.mxu0 0.0
    %916 = vmatprep.subr.mxu0 0.0
    %917 = vmatpush1.msra.mxu0 0.0
    %918 = vmatprep.subr.mxu0 0.0
    %919 = vmatpush1.msra.mxu0 0.0
    %920 = vmatprep.subr.mxu0 0.0
    %921 = vmatpush1.msra.mxu0 0.0
    %922 = vmatprep.subr.mxu0 0.0
    %923 = vmatpush1.msra.mxu0 0.0
    %924 = vmatprep.subr.mxu0 0.0
    %925 = vmatpush1.msra.mxu0 0.0
    %926 = vmatprep.subr.mxu0 0.0
    %927 = vmatpush1.msra.mxu0 0.0
    %928 = vmatprep.subr.mxu0 0.0
    %929 = vmatpush1.msra.mxu0 0.0
    %930 = vmatprep.subr.mxu0 0.0
    %931 = vmatpush1.msra.mxu0 0.0
    %932 = vmatprep.subr.mxu0 0.0
    %933 = vmatpush1.msra.mxu0 0.0
    %934 = vmatprep.subr.mxu0 0.0
    %935 = vmatpush1.msra.mxu0 0.0
    %936 = vmatprep.subr.mxu0 0.0
    %937 = vmatpush1.msra.mxu0 0.0
    %938 = vmatprep.subr.mxu0 0.0
    %939 = vmatpush1.msra.mxu0 0.0
    %940 = vmatprep.subr.mxu0 0.0
    %941 = vmatpush1.msra.mxu0 0.0
    %942 = vmatprep.subr.mxu0 0.0
    %943 = vmatpush1.msra.mxu0 0.0
    %944 = vmatprep.subr.mxu0 0.0
    %945 = vmatpush1.msra.mxu0 0.0
    %946 = vmatprep.subr.mxu0 0.0
    %947 = vmatpush1.msra.mxu0 0.0
    %948 = vmatprep.subr.mxu0 0.0
    %949 = vmatpush1.msra.mxu0 0.0
    %950 = vmatprep.subr.mxu0 0.0
    %951 = vmatpush1.msra.mxu0 0.0
    %952 = vmatprep.subr.mxu0 0.0
    %953 = vmatpush1.msra.mxu0 0.0
    %954 = vmatprep.subr.mxu0 0.0
    %955 = vmatpush1.msra.mxu0 0.0
    %956 = vmatprep.subr.mxu0 0.0
    %957 = vmatpush1.msra.mxu0 0.0
    %958 = vmatprep.subr.mxu0 0.0
    %959 = vmatpush1.msra.mxu0 0.0
    %960 = vmatprep.subr.mxu0 0.0
    %961 = vmatpush1.msra.mxu0 0.0
    %962 = vmatprep.subr.mxu0 0.0
    %963 = vmatpush1.msra.mxu0 0.0
    %964 = vmatprep.subr.mxu0 0.0
    %965 = vmatpush1.msra.mxu0 0.0
    %966 = vmatprep.subr.mxu0 0.0
    %967 = vmatpush1.msra.mxu0 0.0
    %968 = vmatprep.subr.mxu0 0.0
    %969 = vmatpush1.msra.mxu0 0.0
    %970 = vmatprep.subr.mxu0 0.0
    %971 = vmatpush1.msra.mxu0 0.0
    %972 = vmatprep.subr.mxu0 0.0
    %973 = vmatpush1.msra.mxu0 0.0
    %974 = vmatprep.subr.mxu0 0.0
    %975 = vmatpush1.msra.mxu0 0.0
    %976 = vmatprep.mubr.f32.mxu0 0.0
    %977 = vmatmul.mubr.f32.gmra.mrb[0].mxu0 %v358
    %v978 = vpop.f32.mrb[0].mxu0
    %v979 = vadd.f32 %v911, %v978
    %v980 = vpop.f32.mrb[0].mxu0
    %981 = vdwg.mxu0
    %v982 = vmul.f32 %v979, %v909
    %v983 = vrot.slane %v982, 4
    %v984 = vadd.f32 %v982, %v983
    %v985 = vrot.slane %v984, 2
    %v986 = vadd.f32 %v984, %v985
    %v987 = vrot.slane %v986, 1
    %v988 = vadd.f32 %v986, %v987
    %v989 = vmul.f32 %v988, %v808
    %v990 = vadd.f32 %v806, %v989
    %v991 = vsel %vm900, %v909, %v807
    %v992 = vld [vmem:[%s6 + $0x4] sm:$0x1]
    %993 = vmatprep.subr.mxu0 0.0
    %994 = vmatpush1.msra.mxu0 %v901
    %995 = vmatprep.subr.mxu0 0.0
    %996 = vmatpush1.msra.mxu0 0.0
    %997 = vmatprep.subr.mxu0 0.0
    %998 = vmatpush1.msra.mxu0 0.0
    %999 = vmatprep.subr.mxu0 0.0
    %1000 = vmatpush1.msra.mxu0 0.0
    %1001 = vmatprep.subr.mxu0 0.0
    %1002 = vmatpush1.msra.mxu0 0.0
    %1003 = vmatprep.subr.mxu0 0.0
    %1004 = vmatpush1.msra.mxu0 0.0
    %1005 = vmatprep.subr.mxu0 0.0
    %1006 = vmatpush1.msra.mxu0 0.0
    %1007 = vmatprep.subr.mxu0 0.0
    %1008 = vmatpush1.msra.mxu0 0.0
    %1009 = vmatprep.subr.mxu0 0.0
    %1010 = vmatpush1.msra.mxu0 0.0
    %1011 = vmatprep.subr.mxu0 0.0
    %1012 = vmatpush1.msra.mxu0 0.0
    %1013 = vmatprep.subr.mxu0 0.0
    %1014 = vmatpush1.msra.mxu0 0.0
    %1015 = vmatprep.subr.mxu0 0.0
    %1016 = vmatpush1.msra.mxu0 0.0
    %1017 = vmatprep.subr.mxu0 0.0
    %1018 = vmatpush1.msra.mxu0 0.0
    %1019 = vmatprep.subr.mxu0 0.0
    %1020 = vmatpush1.msra.mxu0 0.0
    %1021 = vmatprep.subr.mxu0 0.0
    %1022 = vmatpush1.msra.mxu0 0.0
    %1023 = vmatprep.subr.mxu0 0.0
    %1024 = vmatpush1.msra.mxu0 0.0
    %1025 = vmatprep.subr.mxu0 0.0
    %1026 = vmatpush1.msra.mxu0 0.0
    %1027 = vmatprep.subr.mxu0 0.0
    %1028 = vmatpush1.msra.mxu0 0.0
    %1029 = vmatprep.subr.mxu0 0.0
    %1030 = vmatpush1.msra.mxu0 0.0
    %1031 = vmatprep.subr.mxu0 0.0
    %1032 = vmatpush1.msra.mxu0 0.0
    %1033 = vmatprep.subr.mxu0 0.0
    %1034 = vmatpush1.msra.mxu0 0.0
    %1035 = vmatprep.subr.mxu0 0.0
    %1036 = vmatpush1.msra.mxu0 0.0
    %1037 = vmatprep.subr.mxu0 0.0
    %1038 = vmatpush1.msra.mxu0 0.0
    %1039 = vmatprep.subr.mxu0 0.0
    %1040 = vmatpush1.msra.mxu0 0.0
    %1041 = vmatprep.subr.mxu0 0.0
    %1042 = vmatpush1.msra.mxu0 0.0
    %1043 = vmatprep.subr.mxu0 0.0
    %1044 = vmatpush1.msra.mxu0 0.0
    %1045 = vmatprep.subr.mxu0 0.0
    %1046 = vmatpush1.msra.mxu0 0.0
    %1047 = vmatprep.subr.mxu0 0.0
    %1048 = vmatpush1.msra.mxu0 0.0
    %1049 = vmatprep.subr.mxu0 0.0
    %1050 = vmatpush1.msra.mxu0 0.0
    %1051 = vmatprep.subr.mxu0 0.0
    %1052 = vmatpush1.msra.mxu0 0.0
    %1053 = vmatprep.subr.mxu0 0.0
    %1054 = vmatpush1.msra.mxu0 0.0
    %1055 = vmatprep.subr.mxu0 0.0
    %1056 = vmatpush1.msra.mxu0 0.0
    %1057 = vmatprep.mubr.f32.mxu0 0.0
    %1058 = vmatmul.mubr.f32.gmra.mrb[0].mxu0 %v254
    %v1059 = vpop.f32.mrb[0].mxu0
    %v1060 = vadd.f32 0.0, %v1059
    %v1061 = vpop.f32.mrb[0].mxu0
    %1062 = vdwg.mxu0
    %s1063 = scalar_lea.vmem [#allocation7], 32
    %v1064 = vld [vmem:[%s1063] sm:$0xff]
    %v1065 = vmul.f32 %v1060, %v1064
    %v1066 = vrot.slane %v1065, 4
    %v1067 = vmax.f32 %v1065, %v1066
    %v1068 = vrot.slane %v1067, 2
    %v1069 = vmax.f32 %v1067, %v1068
    %v1070 = vrot.slane %v1069, 1
    %v1071 = vmax.f32 %v1069, %v1070
    %v1072 = vrcp.pop %v1071
    %v1073 = vlog2.pop %v1072
    %v1074 = vmul.f32 %v1073, 0.6931472
    %v1075 = vmul.f32 %v1074, %v992
    %v1076 = vsub.f32 %v892, %v1075
    %vm1077 = vcmp.gt.f32.partialorder %v992, 0.0
    %v1078 = vmul.f32 %v1065, %v1072
    %v1079 = vsel %vm1077, 1, 0
    %v1080 = vlaneseq
    %v1081 = vshrl.u32 %v1080, 7
    %v1082 = vsub.s32 0, %v1081
    %v1083 = vrot.slane %v1079, %v1082
    %vm1084 = vcmp.eq.s32.totalorder %v1083, 1
    %v1085 = vsel %vm1084, %v1078, %v901
    %v1086 = vld [vmem:[%s5 + $0x4] sm:$0x1]
    %v1087 = vlaneseq
    %v1088 = vshrl.u32 %v1087, 7
    %v1089 = vsub.s32 0, %v1088
    %v1090 = vrot.slane %v1086, %v1089
    %vm1091 = vcmp.eq.s32.totalorder %v46, %v1090
    %v1092 = vsel %vm1091, 1, 0
    %v1093 = vcvt.s32.f32 %v1092
    %s1094 = scalar_lea.vmem [#allocation8], 32
    %v1095 = vld [vmem:[%s1094] sm:$0xff]
    %1096 = vmatprep.subr.mxu0 0.0
    %1097 = vmatpush1.msra.mxu0 %v909
    %1098 = vmatprep.subr.mxu0 0.0
    %1099 = vmatpush1.msra.mxu0 0.0
    %1100 = vmatprep.subr.mxu0 0.0
    %1101 = vmatpush1.msra.mxu0 0.0
    %1102 = vmatprep.subr.mxu0 0.0
    %1103 = vmatpush1.msra.mxu0 0.0
    %1104 = vmatprep.subr.mxu0 0.0
    %1105 = vmatpush1.msra.mxu0 0.0
    %1106 = vmatprep.subr.mxu0 0.0
    %1107 = vmatpush1.msra.mxu0 0.0
    %1108 = vmatprep.subr.mxu0 0.0
    %1109 = vmatpush1.msra.mxu0 0.0
    %1110 = vmatprep.subr.mxu0 0.0
    %1111 = vmatpush1.msra.mxu0 0.0
    %1112 = vmatprep.subr.mxu0 0.0
    %1113 = vmatpush1.msra.mxu0 0.0
    %1114 = vmatprep.subr.mxu0 0.0
    %1115 = vmatpush1.msra.mxu0 0.0
    %1116 = vmatprep.subr.mxu0 0.0
    %1117 = vmatpush1.msra.mxu0 0.0
    %1118 = vmatprep.subr.mxu0 0.0
    %1119 = vmatpush1.msra.mxu0 0.0
    %1120 = vmatprep.subr.mxu0 0.0
    %1121 = vmatpush1.msra.mxu0 0.0
    %1122 = vmatprep.subr.mxu0 0.0
    %1123 = vmatpush1.msra.mxu0 0.0
    %1124 = vmatprep.subr.mxu0 0.0
    %1125 = vmatpush1.msra.mxu0 0.0
    %1126 = vmatprep.subr.mxu0 0.0
    %1127 = vmatpush1.msra.mxu0 0.0
    %1128 = vmatprep.subr.mxu0 0.0
    %1129 = vmatpush1.msra.mxu0 0.0
    %1130 = vmatprep.subr.mxu0 0.0
    %1131 = vmatpush1.msra.mxu0 0.0
    %1132 = vmatprep.subr.mxu0 0.0
    %1133 = vmatpush1.msra.mxu0 0.0
    %1134 = vmatprep.subr.mxu0 0.0
    %1135 = vmatpush1.msra.mxu0 0.0
    %1136 = vmatprep.subr.mxu0 0.0
    %1137 = vmatpush1.msra.mxu0 0.0
    %1138 = vmatprep.subr.mxu0 0.0
    %1139 = vmatpush1.msra.mxu0 0.0
    %1140 = vmatprep.subr.mxu0 0.0
    %1141 = vmatpush1.msra.mxu0 0.0
    %1142 = vmatprep.subr.mxu0 0.0
    %1143 = vmatpush1.msra.mxu0 0.0
    %1144 = vmatprep.subr.mxu0 0.0
    %1145 = vmatpush1.msra.mxu0 0.0
    %1146 = vmatprep.subr.mxu0 0.0
    %1147 = vmatpush1.msra.mxu0 0.0
    %1148 = vmatprep.subr.mxu0 0.0
    %1149 = vmatpush1.msra.mxu0 0.0
    %1150 = vmatprep.subr.mxu0 0.0
    %1151 = vmatpush1.msra.mxu0 0.0
    %1152 = vmatprep.subr.mxu0 0.0
    %1153 = vmatpush1.msra.mxu0 0.0
    %1154 = vmatprep.subr.mxu0 0.0
    %1155 = vmatpush1.msra.mxu0 0.0
    %1156 = vmatprep.subr.mxu0 0.0
    %1157 = vmatpush1.msra.mxu0 0.0
    %1158 = vmatprep.subr.mxu0 0.0
    %1159 = vmatpush1.msra.mxu0 0.0
    %1160 = vmatprep.mubr.f32.mxu0 0.0
    %1161 = vmatmul.mubr.f32.gmra.mrb[0].mxu0 %v358
    %v1162 = vpop.f32.mrb[0].mxu0
    %v1163 = vadd.f32 %v1095, %v1162
    %v1164 = vpop.f32.mrb[0].mxu0
    %1165 = vdwg.mxu0
    %v1166 = vmul.f32 %v1163, %v1093
    %v1167 = vrot.slane %v1166, 4
    %v1168 = vadd.f32 %v1166, %v1167
    %v1169 = vrot.slane %v1168, 2
    %v1170 = vadd.f32 %v1168, %v1169
    %v1171 = vrot.slane %v1170, 1
    %v1172 = vadd.f32 %v1170, %v1171
    %v1173 = vmul.f32 %v1172, %v992
    %v1174 = vadd.f32 %v990, %v1173
    %v1175 = vsel %vm1084, %v1093, %v991
    %v1176 = vld [vmem:[%s6 + $0x5] sm:$0x1]
    %1177 = vmatprep.subr.mxu0 0.0
    %1178 = vmatpush1.msra.mxu0 %v1085
    %1179 = vmatprep.subr.mxu0 0.0
    %1180 = vmatpush1.msra.mxu0 0.0
    %1181 = vmatprep.subr.mxu0 0.0
    %1182 = vmatpush1.msra.mxu0 0.0
    %1183 = vmatprep.subr.mxu0 0.0
    %1184 = vmatpush1.msra.mxu0 0.0
    %1185 = vmatprep.subr.mxu0 0.0
    %1186 = vmatpush1.msra.mxu0 0.0
    %1187 = vmatprep.subr.mxu0 0.0
    %1188 = vmatpush1.msra.mxu0 0.0
    %1189 = vmatprep.subr.mxu0 0.0
    %1190 = vmatpush1.msra.mxu0 0.0
    %1191 = vmatprep.subr.mxu0 0.0
    %1192 = vmatpush1.msra.mxu0 0.0
    %1193 = vmatprep.subr.mxu0 0.0
    %1194 = vmatpush1.msra.mxu0 0.0
    %1195 = vmatprep.subr.mxu0 0.0
    %1196 = vmatpush1.msra.mxu0 0.0
    %1197 = vmatprep.subr.mxu0 0.0
    %1198 = vmatpush1.msra.mxu0 0.0
    %1199 = vmatprep.subr.mxu0 0.0
    %1200 = vmatpush1.msra.mxu0 0.0
    %1201 = vmatprep.subr.mxu0 0.0
    %1202 = vmatpush1.msra.mxu0 0.0
    %1203 = vmatprep.subr.mxu0 0.0
    %1204 = vmatpush1.msra.mxu0 0.0
    %1205 = vmatprep.subr.mxu0 0.0
    %1206 = vmatpush1.msra.mxu0 0.0
    %1207 = vmatprep.subr.mxu0 0.0
    %1208 = vmatpush1.msra.mxu0 0.0
    %1209 = vmatprep.subr.mxu0 0.0
    %1210 = vmatpush1.msra.mxu0 0.0
    %1211 = vmatprep.subr.mxu0 0.0
    %1212 = vmatpush1.msra.mxu0 0.0
    %1213 = vmatprep.subr.mxu0 0.0
    %1214 = vmatpush1.msra.mxu0 0.0
    %1215 = vmatprep.subr.mxu0 0.0
    %1216 = vmatpush1.msra.mxu0 0.0
    %1217 = vmatprep.subr.mxu0 0.0
    %1218 = vmatpush1.msra.mxu0 0.0
    %1219 = vmatprep.subr.mxu0 0.0
    %1220 = vmatpush1.msra.mxu0 0.0
    %1221 = vmatprep.subr.mxu0 0.0
    %1222 = vmatpush1.msra.mxu0 0.0
    %1223 = vmatprep.subr.mxu0 0.0
    %1224 = vmatpush1.msra.mxu0 0.0
    %1225 = vmatprep.subr.mxu0 0.0
    %1226 = vmatpush1.msra.mxu0 0.0
    %1227 = vmatprep.subr.mxu0 0.0
    %1228 = vmatpush1.msra.mxu0 0.0
    %1229 = vmatprep.subr.mxu0 0.0
    %1230 = vmatpush1.msra.mxu0 0.0
    %1231 = vmatprep.subr.mxu0 0.0
    %1232 = vmatpush1.msra.mxu0 0.0
    %1233 = vmatprep.subr.mxu0 0.0
    %1234 = vmatpush1.msra.mxu0 0.0
    %1235 = vmatprep.subr.mxu0 0.0
    %1236 = vmatpush1.msra.mxu0 0.0
    %1237 = vmatprep.subr.mxu0 0.0
    %1238 = vmatpush1.msra.mxu0 0.0
    %1239 = vmatprep.subr.mxu0 0.0
    %1240 = vmatpush1.msra.mxu0 0.0
    %1241 = vmatprep.mubr.f32.mxu0 0.0
    %1242 = vmatmul.mubr.f32.gmra.mrb[0].mxu0 %v254
    %v1243 = vpop.f32.mrb[0].mxu0
    %v1244 = vadd.f32 0.0, %v1243
    %v1245 = vpop.f32.mrb[0].mxu0
    %1246 = vdwg.mxu0
    %s1247 = scalar_lea.vmem [#allocation7], 40
    %v1248 = vld [vmem:[%s1247] sm:$0xff]
    %v1249 = vmul.f32 %v1244, %v1248
    %v1250 = vrot.slane %v1249, 4
    %v1251 = vmax.f32 %v1249, %v1250
    %v1252 = vrot.slane %v1251, 2
    %v1253 = vmax.f32 %v1251, %v1252
    %v1254 = vrot.slane %v1253, 1
    %v1255 = vmax.f32 %v1253, %v1254
    %v1256 = vrcp.pop %v1255
    %v1257 = vlog2.pop %v1256
    %v1258 = vmul.f32 %v1257, 0.6931472
    %v1259 = vmul.f32 %v1258, %v1176
    %v1260 = vsub.f32 %v1076, %v1259
    %vm1261 = vcmp.gt.f32.partialorder %v1176, 0.0
    %v1262 = vmul.f32 %v1249, %v1256
    %v1263 = vsel %vm1261, 1, 0
    %v1264 = vlaneseq
    %v1265 = vshrl.u32 %v1264, 7
    %v1266 = vsub.s32 0, %v1265
    %v1267 = vrot.slane %v1263, %v1266
    %vm1268 = vcmp.eq.s32.totalorder %v1267, 1
    %v1269 = vsel %vm1268, %v1262, %v1085
    %v1270 = vld [vmem:[%s5 + $0x5] sm:$0x1]
    %v1271 = vlaneseq
    %v1272 = vshrl.u32 %v1271, 7
    %v1273 = vsub.s32 0, %v1272
    %v1274 = vrot.slane %v1270, %v1273
    %vm1275 = vcmp.eq.s32.totalorder %v46, %v1274
    %v1276 = vsel %vm1275, 1, 0
    %v1277 = vcvt.s32.f32 %v1276
    %s1278 = scalar_lea.vmem [#allocation8], 40
    %v1279 = vld [vmem:[%s1278] sm:$0xff]
    %1280 = vmatprep.subr.mxu0 0.0
    %1281 = vmatpush1.msra.mxu0 %v1093
    %1282 = vmatprep.subr.mxu0 0.0
    %1283 = vmatpush1.msra.mxu0 0.0
    %1284 = vmatprep.subr.mxu0 0.0
    %1285 = vmatpush1.msra.mxu0 0.0
    %1286 = vmatprep.subr.mxu0 0.0
    %1287 = vmatpush1.msra.mxu0 0.0
    %1288 = vmatprep.subr.mxu0 0.0
    %1289 = vmatpush1.msra.mxu0 0.0
    %1290 = vmatprep.subr.mxu0 0.0
    %1291 = vmatpush1.msra.mxu0 0.0
    %1292 = vmatprep.subr.mxu0 0.0
    %1293 = vmatpush1.msra.mxu0 0.0
    %1294 = vmatprep.subr.mxu0 0.0
    %1295 = vmatpush1.msra.mxu0 0.0
    %1296 = vmatprep.subr.mxu0 0.0
    %1297 = vmatpush1.msra.mxu0 0.0
    %1298 = vmatprep.subr.mxu0 0.0
    %1299 = vmatpush1.msra.mxu0 0.0
    %1300 = vmatprep.subr.mxu0 0.0
    %1301 = vmatpush1.msra.mxu0 0.0
    %1302 = vmatprep.subr.mxu0 0.0
    %1303 = vmatpush1.msra.mxu0 0.0
    %1304 = vmatprep.subr.mxu0 0.0
    %1305 = vmatpush1.msra.mxu0 0.0
    %1306 = vmatprep.subr.mxu0 0.0
    %1307 = vmatpush1.msra.mxu0 0.0
    %1308 = vmatprep.subr.mxu0 0.0
    %1309 = vmatpush1.msra.mxu0 0.0
    %1310 = vmatprep.subr.mxu0 0.0
    %1311 = vmatpush1.msra.mxu0 0.0
    %1312 = vmatprep.subr.mxu0 0.0
    %1313 = vmatpush1.msra.mxu0 0.0
    %1314 = vmatprep.subr.mxu0 0.0
    %1315 = vmatpush1.msra.mxu0 0.0
    %1316 = vmatprep.subr.mxu0 0.0
    %1317 = vmatpush1.msra.mxu0 0.0
    %1318 = vmatprep.subr.mxu0 0.0
    %1319 = vmatpush1.msra.mxu0 0.0
    %1320 = vmatprep.subr.mxu0 0.0
    %1321 = vmatpush1.msra.mxu0 0.0
    %1322 = vmatprep.subr.mxu0 0.0
    %1323 = vmatpush1.msra.mxu0 0.0
    %1324 = vmatprep.subr.mxu0 0.0
    %1325 = vmatpush1.msra.mxu0 0.0
    %1326 = vmatprep.subr.mxu0 0.0
    %1327 = vmatpush1.msra.mxu0 0.0
    %1328 = vmatprep.subr.mxu0 0.0
    %1329 = vmatpush1.msra.mxu0 0.0
    %1330 = vmatprep.subr.mxu0 0.0
    %1331 = vmatpush1.msra.mxu0 0.0
    %1332 = vmatprep.subr.mxu0 0.0
    %1333 = vmatpush1.msra.mxu0 0.0
    %1334 = vmatprep.subr.mxu0 0.0
    %1335 = vmatpush1.msra.mxu0 0.0
    %1336 = vmatprep.subr.mxu0 0.0
    %1337 = vmatpush1.msra.mxu0 0.0
    %1338 = vmatprep.subr.mxu0 0.0
    %1339 = vmatpush1.msra.mxu0 0.0
    %1340 = vmatprep.subr.mxu0 0.0
    %1341 = vmatpush1.msra.mxu0 0.0
    %1342 = vmatprep.subr.mxu0 0.0
    %1343 = vmatpush1.msra.mxu0 0.0
    %1344 = vmatprep.mubr.f32.mxu0 0.0
    %1345 = vmatmul.mubr.f32.gmra.mrb[0].mxu0 %v358
    %v1346 = vpop.f32.mrb[0].mxu0
    %v1347 = vadd.f32 %v1279, %v1346
    %v1348 = vpop.f32.mrb[0].mxu0
    %1349 = vdwg.mxu0
    %v1350 = vmul.f32 %v1347, %v1277
    %v1351 = vrot.slane %v1350, 4
    %v1352 = vadd.f32 %v1350, %v1351
    %v1353 = vrot.slane %v1352, 2
    %v1354 = vadd.f32 %v1352, %v1353
    %v1355 = vrot.slane %v1354, 1
    %v1356 = vadd.f32 %v1354, %v1355
    %v1357 = vmul.f32 %v1356, %v1176
    %v1358 = vadd.f32 %v1174, %v1357
    %v1359 = vsel %vm1268, %v1277, %v1175
    %v1360 = vld [vmem:[%s6 + $0x6] sm:$0x1]
    %1361 = vmatprep.subr.mxu0 0.0
    %1362 = vmatpush1.msra.mxu0 %v1269
    %1363 = vmatprep.subr.mxu0 0.0
    %1364 = vmatpush1.msra.mxu0 0.0
    %1365 = vmatprep.subr.mxu0 0.0
    %1366 = vmatpush1.msra.mxu0 0.0
    %1367 = vmatprep.subr.mxu0 0.0
    %1368 = vmatpush1.msra.mxu0 0.0
    %1369 = vmatprep.subr.mxu0 0.0
    %1370 = vmatpush1.msra.mxu0 0.0
    %1371 = vmatprep.subr.mxu0 0.0
    %1372 = vmatpush1.msra.mxu0 0.0
    %1373 = vmatprep.subr.mxu0 0.0
    %1374 = vmatpush1.msra.mxu0 0.0
    %1375 = vmatprep.subr.mxu0 0.0
    %1376 = vmatpush1.msra.mxu0 0.0
    %1377 = vmatprep.subr.mxu0 0.0
    %1378 = vmatpush1.msra.mxu0 0.0
    %1379 = vmatprep.subr.mxu0 0.0
    %1380 = vmatpush1.msra.mxu0 0.0
    %1381 = vmatprep.subr.mxu0 0.0
    %1382 = vmatpush1.msra.mxu0 0.0
    %1383 = vmatprep.subr.mxu0 0.0
    %1384 = vmatpush1.msra.mxu0 0.0
    %1385 = vmatprep.subr.mxu0 0.0
    %1386 = vmatpush1.msra.mxu0 0.0
    %1387 = vmatprep.subr.mxu0 0.0
    %1388 = vmatpush1.msra.mxu0 0.0
    %1389 = vmatprep.subr.mxu0 0.0
    %1390 = vmatpush1.msra.mxu0 0.0
    %1391 = vmatprep.subr.mxu0 0.0
    %1392 = vmatpush1.msra.mxu0 0.0
    %1393 = vmatprep.subr.mxu0 0.0
    %1394 = vmatpush1.msra.mxu0 0.0
    %1395 = vmatprep.subr.mxu0 0.0
    %1396 = vmatpush1.msra.mxu0 0.0
    %1397 = vmatprep.subr.mxu0 0.0
    %1398 = vmatpush1.msra.mxu0 0.0
    %1399 = vmatprep.subr.mxu0 0.0
    %1400 = vmatpush1.msra.mxu0 0.0
    %1401 = vmatprep.subr.mxu0 0.0
    %1402 = vmatpush1.msra.mxu0 0.0
    %1403 = vmatprep.subr.mxu0 0.0
    %1404 = vmatpush1.msra.mxu0 0.0
    %1405 = vmatprep.subr.mxu0 0.0
    %1406 = vmatpush1.msra.mxu0 0.0
    %1407 = vmatprep.subr.mxu0 0.0
    %1408 = vmatpush1.msra.mxu0 0.0
    %1409 = vmatprep.subr.mxu0 0.0
    %1410 = vmatpush1.msra.mxu0 0.0
    %1411 = vmatprep.subr.mxu0 0.0
    %1412 = vmatpush1.msra.mxu0 0.0
    %1413 = vmatprep.subr.mxu0 0.0
    %1414 = vmatpush1.msra.mxu0 0.0
    %1415 = vmatprep.subr.mxu0 0.0
    %1416 = vmatpush1.msra.mxu0 0.0
    %1417 = vmatprep.subr.mxu0 0.0
    %1418 = vmatpush1.msra.mxu0 0.0
    %1419 = vmatprep.subr.mxu0 0.0
    %1420 = vmatpush1.msra.mxu0 0.0
    %1421 = vmatprep.subr.mxu0 0.0
    %1422 = vmatpush1.msra.mxu0 0.0
    %1423 = vmatprep.subr.mxu0 0.0
    %1424 = vmatpush1.msra.mxu0 0.0
    %1425 = vmatprep.mubr.f32.mxu0 0.0
    %1426 = vmatmul.mubr.f32.gmra.mrb[0].mxu0 %v254
    %v1427 = vpop.f32.mrb[0].mxu0
    %v1428 = vadd.f32 0.0, %v1427
    %v1429 = vpop.f32.mrb[0].mxu0
    %1430 = vdwg.mxu0
    %s1431 = scalar_lea.vmem [#allocation7], 48
    %v1432 = vld [vmem:[%s1431] sm:$0xff]
    %v1433 = vmul.f32 %v1428, %v1432
    %v1434 = vrot.slane %v1433, 4
    %v1435 = vmax.f32 %v1433, %v1434
    %v1436 = vrot.slane %v1435, 2
    %v1437 = vmax.f32 %v1435, %v1436
    %v1438 = vrot.slane %v1437, 1
    %v1439 = vmax.f32 %v1437, %v1438
    %v1440 = vrcp.pop %v1439
    %v1441 = vlog2.pop %v1440
    %v1442 = vmul.f32 %v1441, 0.6931472
    %v1443 = vmul.f32 %v1442, %v1360
    %v1444 = vsub.f32 %v1260, %v1443
    %vm1445 = vcmp.gt.f32.partialorder %v1360, 0.0
    %v1446 = vmul.f32 %v1433, %v1440
    %v1447 = vsel %vm1445, 1, 0
    %v1448 = vlaneseq
    %v1449 = vshrl.u32 %v1448, 7
    %v1450 = vsub.s32 0, %v1449
    %v1451 = vrot.slane %v1447, %v1450
    %vm1452 = vcmp.eq.s32.totalorder %v1451, 1
    %v1453 = vsel %vm1452, %v1446, %v1269
    %v1454 = vld [vmem:[%s5 + $0x6] sm:$0x1]
    %v1455 = vlaneseq
    %v1456 = vshrl.u32 %v1455, 7
    %v1457 = vsub.s32 0, %v1456
    %v1458 = vrot.slane %v1454, %v1457
    %vm1459 = vcmp.eq.s32.totalorder %v46, %v1458
    %v1460 = vsel %vm1459, 1, 0
    %v1461 = vcvt.s32.f32 %v1460
    %s1462 = scalar_lea.vmem [#allocation8], 48
    %v1463 = vld [vmem:[%s1462] sm:$0xff]
    %1464 = vmatprep.subr.mxu0 0.0
    %1465 = vmatpush1.msra.mxu0 %v1277
    %1466 = vmatprep.subr.mxu0 0.0
    %1467 = vmatpush1.msra.mxu0 0.0
    %1468 = vmatprep.subr.mxu0 0.0
    %1469 = vmatpush1.msra.mxu0 0.0
    %1470 = vmatprep.subr.mxu0 0.0
    %1471 = vmatpush1.msra.mxu0 0.0
    %1472 = vmatprep.subr.mxu0 0.0
    %1473 = vmatpush1.msra.mxu0 0.0
    %1474 = vmatprep.subr.mxu0 0.0
    %1475 = vmatpush1.msra.mxu0 0.0
    %1476 = vmatprep.subr.mxu0 0.0
    %1477 = vmatpush1.msra.mxu0 0.0
    %1478 = vmatprep.subr.mxu0 0.0
    %1479 = vmatpush1.msra.mxu0 0.0
    %1480 = vmatprep.subr.mxu0 0.0
    %1481 = vmatpush1.msra.mxu0 0.0
    %1482 = vmatprep.subr.mxu0 0.0
    %1483 = vmatpush1.msra.mxu0 0.0
    %1484 = vmatprep.subr.mxu0 0.0
    %1485 = vmatpush1.msra.mxu0 0.0
    %1486 = vmatprep.subr.mxu0 0.0
    %1487 = vmatpush1.msra.mxu0 0.0
    %1488 = vmatprep.subr.mxu0 0.0
    %1489 = vmatpush1.msra.mxu0 0.0
    %1490 = vmatprep.subr.mxu0 0.0
    %1491 = vmatpush1.msra.mxu0 0.0
    %1492 = vmatprep.subr.mxu0 0.0
    %1493 = vmatpush1.msra.mxu0 0.0
    %1494 = vmatprep.subr.mxu0 0.0
    %1495 = vmatpush1.msra.mxu0 0.0
    %1496 = vmatprep.subr.mxu0 0.0
    %1497 = vmatpush1.msra.mxu0 0.0
    %1498 = vmatprep.subr.mxu0 0.0
    %1499 = vmatpush1.msra.mxu0 0.0
    %1500 = vmatprep.subr.mxu0 0.0
    %1501 = vmatpush1.msra.mxu0 0.0
    %1502 = vmatprep.subr.mxu0 0.0
    %1503 = vmatpush1.msra.mxu0 0.0
    %1504 = vmatprep.subr.mxu0 0.0
    %1505 = vmatpush1.msra.mxu0 0.0
    %1506 = vmatprep.subr.mxu0 0.0
    %1507 = vmatpush1.msra.mxu0 0.0
    %1508 = vmatprep.subr.mxu0 0.0
    %1509 = vmatpush1.msra.mxu0 0.0
    %1510 = vmatprep.subr.mxu0 0.0
    %1511 = vmatpush1.msra.mxu0 0.0
    %1512 = vmatprep.subr.mxu0 0.0
    %1513 = vmatpush1.msra.mxu0 0.0
    %1514 = vmatprep.subr.mxu0 0.0
    %1515 = vmatpush1.msra.mxu0 0.0
    %1516 = vmatprep.subr.mxu0 0.0
    %1517 = vmatpush1.msra.mxu0 0.0
    %1518 = vmatprep.subr.mxu0 0.0
    %1519 = vmatpush1.msra.mxu0 0.0
    %1520 = vmatprep.subr.mxu0 0.0
    %1521 = vmatpush1.msra.mxu0 0.0
    %1522 = vmatprep.subr.mxu0 0.0
    %1523 = vmatpush1.msra.mxu0 0.0
    %1524 = vmatprep.subr.mxu0 0.0
    %1525 = vmatpush1.msra.mxu0 0.0
    %1526 = vmatprep.subr.mxu0 0.0
    %1527 = vmatpush1.msra.mxu0 0.0
    %1528 = vmatprep.mubr.f32.mxu0 0.0
    %1529 = vmatmul.mubr.f32.gmra.mrb[0].mxu0 %v358
    %v1530 = vpop.f32.mrb[0].mxu0
    %v1531 = vadd.f32 %v1463, %v1530
    %v1532 = vpop.f32.mrb[0].mxu0
    %1533 = vdwg.mxu0
    %v1534 = vmul.f32 %v1531, %v1461
    %v1535 = vrot.slane %v1534, 4
    %v1536 = vadd.f32 %v1534, %v1535
    %v1537 = vrot.slane %v1536, 2
    %v1538 = vadd.f32 %v1536, %v1537
    %v1539 = vrot.slane %v1538, 1
    %v1540 = vadd.f32 %v1538, %v1539
    %v1541 = vmul.f32 %v1540, %v1360
    %v1542 = vadd.f32 %v1358, %v1541
    %v1543 = vsel %vm1452, %v1461, %v1359
    %v1544 = vld [vmem:[%s6 + $0x7] sm:$0x1]
    %1545 = vmatprep.subr.mxu0 0.0
    %1546 = vmatpush1.msra.mxu0 %v1453
    %1547 = vmatprep.subr.mxu0 0.0
    %1548 = vmatpush1.msra.mxu0 0.0
    %1549 = vmatprep.subr.mxu0 0.0
    %1550 = vmatpush1.msra.mxu0 0.0
    %1551 = vmatprep.subr.mxu0 0.0
    %1552 = vmatpush1.msra.mxu0 0.0
    %1553 = vmatprep.subr.mxu0 0.0
    %1554 = vmatpush1.msra.mxu0 0.0
    %1555 = vmatprep.subr.mxu0 0.0
    %1556 = vmatpush1.msra.mxu0 0.0
    %1557 = vmatprep.subr.mxu0 0.0
    %1558 = vmatpush1.msra.mxu0 0.0
    %1559 = vmatprep.subr.mxu0 0.0
    %1560 = vmatpush1.msra.mxu0 0.0
    %1561 = vmatprep.subr.mxu0 0.0
    %1562 = vmatpush1.msra.mxu0 0.0
    %1563 = vmatprep.subr.mxu0 0.0
    %1564 = vmatpush1.msra.mxu0 0.0
    %1565 = vmatprep.subr.mxu0 0.0
    %1566 = vmatpush1.msra.mxu0 0.0
    %1567 = vmatprep.subr.mxu0 0.0
    %1568 = vmatpush1.msra.mxu0 0.0
    %1569 = vmatprep.subr.mxu0 0.0
    %1570 = vmatpush1.msra.mxu0 0.0
    %1571 = vmatprep.subr.mxu0 0.0
    %1572 = vmatpush1.msra.mxu0 0.0
    %1573 = vmatprep.subr.mxu0 0.0
    %1574 = vmatpush1.msra.mxu0 0.0
    %1575 = vmatprep.subr.mxu0 0.0
    %1576 = vmatpush1.msra.mxu0 0.0
    %1577 = vmatprep.subr.mxu0 0.0
    %1578 = vmatpush1.msra.mxu0 0.0
    %1579 = vmatprep.subr.mxu0 0.0
    %1580 = vmatpush1.msra.mxu0 0.0
    %1581 = vmatprep.subr.mxu0 0.0
    %1582 = vmatpush1.msra.mxu0 0.0
    %1583 = vmatprep.subr.mxu0 0.0
    %1584 = vmatpush1.msra.mxu0 0.0
    %1585 = vmatprep.subr.mxu0 0.0
    %1586 = vmatpush1.msra.mxu0 0.0
    %1587 = vmatprep.subr.mxu0 0.0
    %1588 = vmatpush1.msra.mxu0 0.0
    %1589 = vmatprep.subr.mxu0 0.0
    %1590 = vmatpush1.msra.mxu0 0.0
    %1591 = vmatprep.subr.mxu0 0.0
    %1592 = vmatpush1.msra.mxu0 0.0
    %1593 = vmatprep.subr.mxu0 0.0
    %1594 = vmatpush1.msra.mxu0 0.0
    %1595 = vmatprep.subr.mxu0 0.0
    %1596 = vmatpush1.msra.mxu0 0.0
    %1597 = vmatprep.subr.mxu0 0.0
    %1598 = vmatpush1.msra.mxu0 0.0
    %1599 = vmatprep.subr.mxu0 0.0
    %1600 = vmatpush1.msra.mxu0 0.0
    %1601 = vmatprep.subr.mxu0 0.0
    %1602 = vmatpush1.msra.mxu0 0.0
    %1603 = vmatprep.subr.mxu0 0.0
    %1604 = vmatpush1.msra.mxu0 0.0
    %1605 = vmatprep.subr.mxu0 0.0
    %1606 = vmatpush1.msra.mxu0 0.0
    %1607 = vmatprep.subr.mxu0 0.0
    %1608 = vmatpush1.msra.mxu0 0.0
    %1609 = vmatprep.mubr.f32.mxu0 0.0
    %1610 = vmatmul.mubr.f32.gmra.mrb[0].mxu0 %v254
    %v1611 = vpop.f32.mrb[0].mxu0
    %v1612 = vadd.f32 0.0, %v1611
    %v1613 = vpop.f32.mrb[0].mxu0
    %1614 = vdwg.mxu0
    %s1615 = scalar_lea.vmem [#allocation7], 56
    %v1616 = vld [vmem:[%s1615] sm:$0xff]
    %v1617 = vmul.f32 %v1612, %v1616
    %v1618 = vrot.slane %v1617, 4
    %v1619 = vmax.f32 %v1617, %v1618
    %v1620 = vrot.slane %v1619, 2
    %v1621 = vmax.f32 %v1619, %v1620
    %v1622 = vrot.slane %v1621, 1
    %v1623 = vmax.f32 %v1621, %v1622
    %v1624 = vrcp.pop %v1623
    %v1625 = vlog2.pop %v1624
    %v1626 = vmul.f32 %v1625, 0.6931472
    %v1627 = vmul.f32 %v1626, %v1544
    %v1628 = vsub.f32 %v1444, %v1627
    %vm1629 = vcmp.gt.f32.partialorder %v1544, 0.0
    %v1630 = vmul.f32 %v1617, %v1624
    %v1631 = vsel %vm1629, 1, 0
    %v1632 = vlaneseq
    %v1633 = vshrl.u32 %v1632, 7
    %v1634 = vsub.s32 0, %v1633
    %v1635 = vrot.slane %v1631, %v1634
    %vm1636 = vcmp.eq.s32.totalorder %v1635, 1
    %v1637 = vsel %vm1636, %v1630, %v1453
    %v1638 = vld [vmem:[%s5 + $0x7] sm:$0x1]
    %v1639 = vlaneseq
    %v1640 = vshrl.u32 %v1639, 7
    %v1641 = vsub.s32 0, %v1640
    %v1642 = vrot.slane %v1638, %v1641
    %vm1643 = vcmp.eq.s32.totalorder %v46, %v1642
    %v1644 = vsel %vm1643, 1, 0
    %v1645 = vcvt.s32.f32 %v1644
    %s1646 = scalar_lea.vmem [#allocation8], 56
    %v1647 = vld [vmem:[%s1646] sm:$0xff]
    %1648 = vmatprep.subr.mxu0 0.0
    %1649 = vmatpush1.msra.mxu0 %v1461
    %1650 = vmatprep.subr.mxu0 0.0
    %1651 = vmatpush1.msra.mxu0 0.0
    %1652 = vmatprep.subr.mxu0 0.0
    %1653 = vmatpush1.msra.mxu0 0.0
    %1654 = vmatprep.subr.mxu0 0.0
    %1655 = vmatpush1.msra.mxu0 0.0
    %1656 = vmatprep.subr.mxu0 0.0
    %1657 = vmatpush1.msra.mxu0 0.0
    %1658 = vmatprep.subr.mxu0 0.0
    %1659 = vmatpush1.msra.mxu0 0.0
    %1660 = vmatprep.subr.mxu0 0.0
    %1661 = vmatpush1.msra.mxu0 0.0
    %1662 = vmatprep.subr.mxu0 0.0
    %1663 = vmatpush1.msra.mxu0 0.0
    %1664 = vmatprep.subr.mxu0 0.0
    %1665 = vmatpush1.msra.mxu0 0.0
    %1666 = vmatprep.subr.mxu0 0.0
    %1667 = vmatpush1.msra.mxu0 0.0
    %1668 = vmatprep.subr.mxu0 0.0
    %1669 = vmatpush1.msra.mxu0 0.0
    %1670 = vmatprep.subr.mxu0 0.0
    %1671 = vmatpush1.msra.mxu0 0.0
    %1672 = vmatprep.subr.mxu0 0.0
    %1673 = vmatpush1.msra.mxu0 0.0
    %1674 = vmatprep.subr.mxu0 0.0
    %1675 = vmatpush1.msra.mxu0 0.0
    %1676 = vmatprep.subr.mxu0 0.0
    %1677 = vmatpush1.msra.mxu0 0.0
    %1678 = vmatprep.subr.mxu0 0.0
    %1679 = vmatpush1.msra.mxu0 0.0
    %1680 = vmatprep.subr.mxu0 0.0
    %1681 = vmatpush1.msra.mxu0 0.0
    %1682 = vmatprep.subr.mxu0 0.0
    %1683 = vmatpush1.msra.mxu0 0.0
    %1684 = vmatprep.subr.mxu0 0.0
    %1685 = vmatpush1.msra.mxu0 0.0
    %1686 = vmatprep.subr.mxu0 0.0
    %1687 = vmatpush1.msra.mxu0 0.0
    %1688 = vmatprep.subr.mxu0 0.0
    %1689 = vmatpush1.msra.mxu0 0.0
    %1690 = vmatprep.subr.mxu0 0.0
    %1691 = vmatpush1.msra.mxu0 0.0
    %1692 = vmatprep.subr.mxu0 0.0
    %1693 = vmatpush1.msra.mxu0 0.0
    %1694 = vmatprep.subr.mxu0 0.0
    %1695 = vmatpush1.msra.mxu0 0.0
    %1696 = vmatprep.subr.mxu0 0.0
    %1697 = vmatpush1.msra.mxu0 0.0
    %1698 = vmatprep.subr.mxu0 0.0
    %1699 = vmatpush1.msra.mxu0 0.0
    %1700 = vmatprep.subr.mxu0 0.0
    %1701 = vmatpush1.msra.mxu0 0.0
    %1702 = vmatprep.subr.mxu0 0.0
    %1703 = vmatpush1.msra.mxu0 0.0
    %1704 = vmatprep.subr.mxu0 0.0
    %1705 = vmatpush1.msra.mxu0 0.0
    %1706 = vmatprep.subr.mxu0 0.0
    %1707 = vmatpush1.msra.mxu0 0.0
    %1708 = vmatprep.subr.mxu0 0.0
    %1709 = vmatpush1.msra.mxu0 0.0
    %1710 = vmatprep.subr.mxu0 0.0
    %1711 = vmatpush1.msra.mxu0 0.0
    %1712 = vmatprep.mubr.f32.mxu0 0.0
    %1713 = vmatmul.mubr.f32.gmra.mrb[0].mxu0 %v358
    %v1714 = vpop.f32.mrb[0].mxu0
    %v1715 = vadd.f32 %v1647, %v1714
    %v1716 = vpop.f32.mrb[0].mxu0
    %1717 = vdwg.mxu0
    %v1718 = vmul.f32 %v1715, %v1645
    %v1719 = vrot.slane %v1718, 4
    %v1720 = vadd.f32 %v1718, %v1719
    %v1721 = vrot.slane %v1720, 2
    %v1722 = vadd.f32 %v1720, %v1721
    %v1723 = vrot.slane %v1722, 1
    %v1724 = vadd.f32 %v1722, %v1723
    %v1725 = vmul.f32 %v1724, %v1544
    %v1726 = vadd.f32 %v1542, %v1725
    %v1727 = vsel %vm1636, %v1645, %v1543
    %1728 = vst [vmem:[#allocation2] sm:$0xff] %v1637
    %1729 = vst [vmem:[#allocation3] sm:$0x1] %v1628
    %1730 = vst [vmem:[#allocation4] sm:$0x1] %v1726
    %1731 = vst [vmem:[#allocation5] sm:$0xff] %v1645
    %1732 = vst [vmem:[#allocation6] sm:$0xff] %v1727
    // Predicated region
    $region38: #{tpu_custom_call.1} parent=1 // pred_check
      %p1733 = pneg %p47
    $region39: #{tpu_custom_call.1} parent=1 // pred_check_branch
      %1735 = sbr.rel (%p1733) target = $region41
    $region40: #{tpu_custom_call.1} parent=1 // pred_region
      %v1736 = vmul.f32 %v42, 1.442695
      %v1737 = vpow.pop %v1736
      %1739 = vset.pattern.permute.xlu0 0
      %1740 = vperm.xlu0 %1739, %v1737
      %v1741 = vpop.permute.xlu0 %1740
      %v1743 = vmul.f32 %v1637, %v1741
      %v1744 = vrot.slane %v1743, 4
      %v1745 = vadd.f32 %v1743, %v1744
      %v1746 = vrot.slane %v1745, 2
      %v1747 = vadd.f32 %v1745, %v1746
      %v1748 = vrot.slane %v1747, 1
      %v1749 = vadd.f32 %v1747, %v1748
      %v1750 = vlog2.pop %v1749
      %v1751 = vmul.f32 %v1750, 0.6931472
      %v1752 = vadd.f32 %v1751, %v1628
      %1754 = vset.pattern.permute.xlu0 0
      %1755 = vperm.xlu0 %1754, %v42
      %v1756 = vpop.permute.xlu0 %1755
      %v1758 = vmul.f32 %v1756, %v1727
      %v1759 = vrot.slane %v1758, 4
      %v1760 = vadd.f32 %v1758, %v1759
      %v1761 = vrot.slane %v1760, 2
      %v1762 = vadd.f32 %v1760, %v1761
      %v1763 = vrot.slane %v1762, 1
      %v1764 = vadd.f32 %v1762, %v1763
      %v1765 = vadd.f32 %v1726, %v1764
      %v1766 = vsub.f32 %v1752, %v1765
      %1767 = vst [vmem:[#allocation11] sm:$0x1] %v1766
    $region41: #{tpu_custom_call.1} parent=1 // pred_fallthru
      _
    // Predicated region
    $region42: #{tpu_custom_call.1} parent=1 // pred_check
      _
    $region43: #{tpu_custom_call.1} parent=1 // pred_check_branch
      %1769 = sbr.rel (0) target = $region45
    $region44: #{tpu_custom_call.1} parent=1 // pred_region
      %s1771 = ssub.s32 16, 16
      %1772 = vsyncadd [#allocation10], %s1771
      %s1774 = sshll.u32 [#allocation11], 4
      %s1775 = int_to_ptr.vmem [resolvable:$true] %s1774
      %1777 = dma.vmem_to_hbm [thread:$0]  %s1775, 16, %s7, [#allocation10]
    $region45: #{tpu_custom_call.1} parent=1 // pred_fallthru
      _
    // Predicated region
    $region46: #{tpu_custom_call.1} parent=1 // pred_check
      _
    $region47: #{tpu_custom_call.1} parent=1 // pred_check_branch
      %1779 = sbr.rel (0) target = $region49
    $region48: #{tpu_custom_call.1} parent=1 // pred_region
      %1780 = dma.done [#allocation10], 16
    $region49: #{tpu_custom_call.1} parent=1 // pred_fallthru
      _
    %1781 = vsyncpa [#allocation9], 1
    %1782 = vsyncpa [#allocation10], 1

</llo_original>
